<compile_context>
chip_gen: v6e
topology: v6e:2x2x1
jax: 0.10.0
libtpu: 0.0.40
codegen_flags: <defaults>
</compile_context>

<pallas_src>
import math
import functools

import jax
import jax.numpy as jnp
from jax.experimental import pallas as pl
from jax.experimental.pallas import tpu as pltpu


FILTERS = (3, 3, 3)
FT = (1,) + FILTERS + (1,)      # (1, 3, 3, 3, 1)
NUM_LAYERS = len(FT) - 1        # 4
P_PAD = 128                     # packed-param lane width (one vreg wide)


def _param_layout():
    """Packed per-channel parameter table layout (flat column -> meaning)."""
    idx = {}
    p = 0
    idx["q"] = p                # quantile / median
    p += 1
    for k in range(NUM_LAYERS):
        f_in, f_out = FT[k], FT[k + 1]
        idx[("W", k)] = p       # softplus(H_k), (f_out, f_in) row-major
        p += f_out * f_in
        idx[("b", k)] = p       # b_k
        p += f_out
        idx[("t", k)] = p       # tanh(a_k)
        p += f_out
    return idx, p


PARAM_IDX, NUM_PARAMS = _param_layout()       # NUM_PARAMS == 45
assert NUM_PARAMS <= P_PAD


def _ffm_kernel(x_ref, p_ref, vals_ref, like_ref, *, likelihood_bound,
                sign_reversal, n_chunks, chunk):
    """Fused quantize + double CDF + likelihood on one (1, tc, tn) tile.

    x_ref/vals_ref/like_ref: (1, tc, tn) VMEM tiles (channels on sublanes,
    flattened spatial on lanes).  p_ref: (tc, P_PAD) packed per-channel params
    (already softplus/tanh-transformed in the wrapper) — a single resident vreg.
    """
    p = p_ref[...]                               # (tc, P_PAD) — loaded once

    def param(i):
        # (tc, 1) column; lane-broadcasts against (tc, chunk) in arithmetic.
        return p[:, i:i + 1]

    q = param(PARAM_IDX["q"])

    def cdf(z):
        logits = [z]                             # list of (tc, chunk) planes
        for k in range(NUM_LAYERS):
            f_in, f_out = FT[k], FT[k + 1]
            w0 = PARAM_IDX[("W", k)]
            b0 = PARAM_IDX[("b", k)]
            t0 = PARAM_IDX[("t", k)]
            outs = []
            for j in range(f_out):
                acc = param(w0 + j * f_in) * logits[0]
                for ii in range(1, f_in):
                    acc = acc + param(w0 + j * f_in + ii) * logits[ii]
                acc = acc + param(b0 + j)
                # per the spec, the tanh factor is applied on every layer
                acc = acc + param(t0 + j) * jnp.tanh(acc)
                outs.append(acc)
            logits = outs
        return logits[0]                         # final f_out == 1

    # Static chunk loop: bounds the live working set to one (tc, chunk) slab
    # (~35 vregs) while the grid step amortizes the ~0.35 µs pipeline overhead
    # over n_chunks * chunk lanes of compute.
    for ci in range(n_chunks):
        lo = ci * chunk
        x = x_ref[0, :, lo:lo + chunk]           # (tc, chunk)
        # TODO(synk): `Quantizer` is not defined in the spec; eval-mode hard
        # rounding around the per-channel quantiles is implemented here
        # (training-time additive-noise quantization is omitted).
        v = jnp.round(x - q) + q
        vals_ref[0, :, lo:lo + chunk] = v

        lower = cdf(v - 0.5)
        upper = cdf(v + 0.5)

        if sign_reversal:
            ssum = lower + upper
            sgn = jnp.where(ssum > 0.0, 1.0, jnp.where(ssum < 0.0, -1.0, 0.0))
            # sigmoid(a) - sigmoid(b) == 0.5 * (tanh(a/2) - tanh(b/2)):
            # 2 EUP tanhs instead of 2 exps + 2 f32 divides on the VALU slot.
            like = 0.5 * jnp.abs(jnp.tanh(-0.5 * (sgn * upper)) -
                                 jnp.tanh(-0.5 * (sgn * lower)))
        else:
            like = 0.5 * (jnp.tanh(0.5 * upper) - jnp.tanh(0.5 * lower))

        if likelihood_bound > 0.0:
            like = jnp.maximum(like, likelihood_bound)
        like_ref[0, :, lo:lo + chunk] = like


def make_params(channels, key):
    """Parameters mirroring CDF.__init__/FullFactorizedModel.__init__ shapes.

    (a_k / quantiles get small random values instead of the zeros init so the
    tanh-factor and quantile paths are actually exercised by the test.)
    """
    init_scale = 10.0
    scale = init_scale ** (1.0 / (len(FILTERS) + 1))
    H, a, b = [], [], []
    for k in range(NUM_LAYERS):
        f_in, f_out = FT[k], FT[k + 1]
        h_init = math.log(math.expm1(1.0 / scale / f_out))
        H.append(jnp.full((channels, f_out, f_in), h_init, dtype=jnp.float32))
        key, k1, k2 = jax.random.split(key, 3)
        a.append(jax.random.uniform(k1, (channels, f_out, 1),
                                    minval=-0.5, maxval=0.5, dtype=jnp.float32))
        b.append(jax.random.uniform(k2, (channels, f_out, 1),
                                    minval=-0.5, maxval=0.5, dtype=jnp.float32))
    key, kq = jax.random.split(key)
    quantiles = jax.random.uniform(kq, (channels, 1, 1),
                                   minval=-0.2, maxval=0.2, dtype=jnp.float32)
    return {"H": H, "a": a, "b": b}, quantiles


def _pack_params(params, quantiles):
    """softplus/tanh-transform once and pack into a (C, NUM_PARAMS) table."""
    C = quantiles.shape[0]
    cols = [quantiles.reshape(C, 1)]
    for k in range(NUM_LAYERS):
        f_in, f_out = FT[k], FT[k + 1]
        cols.append(jax.nn.softplus(params["H"][k]).reshape(C, f_out * f_in))
        cols.append(params["b"][k].reshape(C, f_out))
        cols.append(jnp.tanh(params["a"][k]).reshape(C, f_out))
    packed = jnp.concatenate(cols, axis=1)        # (C, NUM_PARAMS)
    assert packed.shape[1] == NUM_PARAMS
    return packed


@functools.partial(jax.jit, static_argnames=(
    "likelihood_bound", "sign_reversal", "chunk", "max_chunks", "tc"))
def full_factorized_forward(inputs, params, quantiles, *,
                            likelihood_bound=1e-6, sign_reversal=True,
                            chunk=512, max_chunks=4, tc=8):
    """inputs: (B, C, *spatial) f32 -> (values, likelihood), both input-shaped.

    No physical transposes: the kernel works directly on the (B, C, S) layout
    with channels on sublanes and flattened spatial on lanes.
    """
    shape = inputs.shape
    B, C = shape[0], shape[1]
    S = 1
    for d in shape[2:]:
        S *= int(d)
    x3 = inputs.reshape(B, C, S).astype(jnp.float32)

    # Tile geometry: tn = n_chunks * chunk lanes per grid step (clamped for
    # small inputs so padding waste stays bounded).
    n_chunks = max(1, min(int(max_chunks), pl.cdiv(S, chunk)))
    tn = chunk * n_chunks
    C_pad = pl.cdiv(C, tc) * tc
    S_pad = pl.cdiv(S, tn) * tn
    x3p = jnp.pad(x3, ((0, 0), (0, C_pad - C), (0, S_pad - S)))

    # Per-channel params: transforms done once, packed (C_pad, 128).  Zero rows
    # for padded channels give lower == upper == 0 -> likelihood == bound
    # (no NaNs); padded rows/lanes are sliced off below.
    packed = _pack_params(params, quantiles)
    packed = jnp.pad(packed, ((0, C_pad - C), (0, P_PAD - NUM_PARAMS)))

    num_n = S_pad // tn
    num_c = C_pad // tc
    grid = (num_n, B, num_c)     # spatial blocks leading (v7x megacore friendly)

    n_elems = int(B) * int(C_pad) * int(S_pad)
    cost = pl.CostEstimate(flops=300 * n_elems,
                           transcendentals=22 * n_elems,
                           bytes_accessed=12 * n_elems)

    kernel = functools.partial(
        _ffm_kernel,
        likelihood_bound=float(likelihood_bound),
        sign_reversal=bool(sign_reversal),
        n_chunks=n_chunks, chunk=chunk)

    vals, like = pl.pallas_call(
        kernel,
        out_shape=(jax.ShapeDtypeStruct((B, C_pad, S_pad), jnp.float32),
                   jax.ShapeDtypeStruct((B, C_pad, S_pad), jnp.float32)),
        grid_spec=pltpu.PrefetchScalarGridSpec(
            num_scalar_prefetch=0,
            grid=grid,
            in_specs=[
                pl.BlockSpec((1, tc, tn), lambda n, b, c: (b, c, n)),
                # tiny (tc, 128) param block; re-fetch per step is negligible
                pl.BlockSpec((tc, P_PAD), lambda n, b, c: (c, 0)),
            ],
            out_specs=[
                pl.BlockSpec((1, tc, tn), lambda n, b, c: (b, c, n)),
                pl.BlockSpec((1, tc, tn), lambda n, b, c: (b, c, n)),
            ],
        ),
        compiler_params=pltpu.CompilerParams(
            dimension_semantics=("parallel", "parallel", "parallel")),
        cost_estimate=cost,
    )(x3p, packed)

    vals = vals[:, :C, :S].reshape(shape)
    like = like[:, :C, :S].reshape(shape)
    return vals, like


# ----------------------- pure-JAX reference (the spec) -----------------------

def _cdf_reference(x, params):
    logits = x                                      # (C, 1, M)
    for k in range(NUM_LAYERS):
        logits = jnp.matmul(jax.nn.softplus(params["H"][k]), logits,
                            precision=jax.lax.Precision.HIGHEST)
        logits = logits + params["b"][k]
        logits = logits + jnp.tanh(params["a"][k]) * jnp.tanh(logits)
    return logits


def full_factorized_reference(inputs, params, quantiles, likelihood_bound):
    perm = (1, 0) + tuple(range(2, inputs.ndim))
    x_t = jnp.transpose(inputs, perm)
    cshape = x_t.shape
    C = cshape[0]
    values = x_t.reshape(C, 1, -1)
    q = quantiles.reshape(C, 1, 1)
    values = jnp.round(values - q) + q              # eval-mode quantizer
    lower = _cdf_reference(values - 0.5, params)
    upper = _cdf_reference(values + 0.5, params)
    sign = jnp.sign(lower + upper)
    like = jnp.abs(jax.nn.sigmoid(-sign * upper) - jax.nn.sigmoid(-sign * lower))
    if likelihood_bound > 0:
        like = jnp.maximum(like, likelihood_bound)
    values = jnp.transpose(values.reshape(cshape), perm)
    like = jnp.transpose(like.reshape(cshape), perm)
    return values, like


if __name__ == "__main__":
    key = jax.random.PRNGKey(0)
    # small shapes; C=6 -> padded to 8, S = 16*16 = 256 -> padded to 512
    B, C, H, W = 3, 6, 16, 16
    likelihood_bound = 1e-6

    key, kx, kp = jax.random.split(key, 3)
    x = 3.0 * jax.random.normal(kx, (B, C, H, W), dtype=jnp.float32)
    params, quantiles = make_params(C, kp)

    vals, like = full_factorized_forward(
        x, params, quantiles, likelihood_bound=likelihood_bound)
    vals, like = jax.block_until_ready((vals, like))

    vals_ref, like_ref = full_factorized_reference(x, params, quantiles,
                                                   likelihood_bound)
    assert vals.shape == x.shape and like.shape == x.shape
    assert jnp.allclose(vals, vals_ref, atol=1e-6, rtol=1e-6), "values mismatch"
    assert jnp.allclose(like, like_ref, atol=1e-5, rtol=1e-5), "likelihood mismatch"

    print("KERNEL_OK")
</pallas_src>

<mosaic_0001>
module attributes {stable_mosaic.version = 11 : i64} {
  func.func @_ffm_kernel(%arg0: i32, %arg1: i32, %arg2: i32, %arg3: memref<1x8x512xf32, #tpu.memory_space<vmem>>, %arg4: memref<8x128xf32, #tpu.memory_space<vmem>>, %arg5: memref<1x8x512xf32, #tpu.memory_space<vmem>>, %arg6: memref<1x8x512xf32, #tpu.memory_space<vmem>>) attributes {dimension_semantics = [#tpu.dimension_semantics<parallel>, #tpu.dimension_semantics<parallel>, #tpu.dimension_semantics<parallel>], iteration_bounds = array<i64: 1, 3, 1>, scalar_prefetch = 0 : i64, scratch_operands = 0 : i64, tpu.core_type = #tpu.core_type<tc>, window_params = [{transform_indices = @transform_0, window_bounds = array<i64: 1, 8, 512>}, {transform_indices = @transform_1, window_bounds = array<i64: 8, 128>}, {transform_indices = @transform_2, window_bounds = array<i64: 1, 8, 512>}, {transform_indices = @transform_3, window_bounds = array<i64: 1, 8, 512>}]} {
    %c0 = arith.constant 0 : index
    %c0_0 = arith.constant 0 : index
    %0 = vector.load %arg4[%c0, %c0_0] : memref<8x128xf32, #tpu.memory_space<vmem>>, vector<8x128xf32>
    %1 = vector.extract_strided_slice %0 {offsets = [0, 0], sizes = [8, 1], strides = [1, 1]} : vector<8x128xf32> to vector<8x1xf32>
    %c0_1 = arith.constant 0 : index
    %c0_2 = arith.constant 0 : index
    %c0_3 = arith.constant 0 : index
    %2 = vector.load %arg3[%c0_1, %c0_2, %c0_3] : memref<1x8x512xf32, #tpu.memory_space<vmem>>, vector<1x8x512xf32>
    %3 = vector.shape_cast %2 : vector<1x8x512xf32> to vector<8x512xf32>
    %4 = vector.broadcast %1 : vector<8x1xf32> to vector<8x512xf32>
    %5 = arith.subf %3, %4 : vector<8x512xf32>
    %6 = math.roundeven %5 : vector<8x512xf32>
    %7 = vector.broadcast %1 : vector<8x1xf32> to vector<8x512xf32>
    %8 = arith.addf %6, %7 : vector<8x512xf32>
    %c0_4 = arith.constant 0 : index
    %c0_5 = arith.constant 0 : index
    %c0_6 = arith.constant 0 : index
    %9 = vector.load %arg5[%c0_4, %c0_5, %c0_6] : memref<1x8x512xf32, #tpu.memory_space<vmem>>, vector<1x8x512xf32>
    %10 = vector.shape_cast %9 : vector<1x8x512xf32> to vector<8x512xf32>
    %11 = vector.shape_cast %8 : vector<8x512xf32> to vector<1x8x512xf32>
    tpu.vector_store %arg5[%c0_4, %c0_5, %c0_6], %11 {strides = array<i32>} : memref<1x8x512xf32, #tpu.memory_space<vmem>>, vector<1x8x512xf32>,
    %cst = arith.constant 5.000000e-01 : f32
    %12 = vector.broadcast %cst : f32 to vector<8x512xf32>
    %13 = arith.subf %8, %12 : vector<8x512xf32>
    %14 = vector.extract_strided_slice %0 {offsets = [0, 1], sizes = [8, 1], strides = [1, 1]} : vector<8x128xf32> to vector<8x1xf32>
    %15 = vector.broadcast %14 : vector<8x1xf32> to vector<8x512xf32>
    %16 = arith.mulf %15, %13 : vector<8x512xf32>
    %17 = vector.extract_strided_slice %0 {offsets = [0, 4], sizes = [8, 1], strides = [1, 1]} : vector<8x128xf32> to vector<8x1xf32>
    %18 = vector.broadcast %17 : vector<8x1xf32> to vector<8x512xf32>
    %19 = arith.addf %16, %18 : vector<8x512xf32>
    %20 = vector.extract_strided_slice %0 {offsets = [0, 7], sizes = [8, 1], strides = [1, 1]} : vector<8x128xf32> to vector<8x1xf32>
    %21 = math.tanh %19 : vector<8x512xf32>
    %22 = vector.broadcast %20 : vector<8x1xf32> to vector<8x512xf32>
    %23 = arith.mulf %22, %21 : vector<8x512xf32>
    %24 = arith.addf %19, %23 : vector<8x512xf32>
    %25 = vector.extract_strided_slice %0 {offsets = [0, 2], sizes = [8, 1], strides = [1, 1]} : vector<8x128xf32> to vector<8x1xf32>
    %26 = vector.broadcast %25 : vector<8x1xf32> to vector<8x512xf32>
    %27 = arith.mulf %26, %13 : vector<8x512xf32>
    %28 = vector.extract_strided_slice %0 {offsets = [0, 5], sizes = [8, 1], strides = [1, 1]} : vector<8x128xf32> to vector<8x1xf32>
    %29 = vector.broadcast %28 : vector<8x1xf32> to vector<8x512xf32>
    %30 = arith.addf %27, %29 : vector<8x512xf32>
    %31 = vector.extract_strided_slice %0 {offsets = [0, 8], sizes = [8, 1], strides = [1, 1]} : vector<8x128xf32> to vector<8x1xf32>
    %32 = math.tanh %30 : vector<8x512xf32>
    %33 = vector.broadcast %31 : vector<8x1xf32> to vector<8x512xf32>
    %34 = arith.mulf %33, %32 : vector<8x512xf32>
    %35 = arith.addf %30, %34 : vector<8x512xf32>
    %36 = vector.extract_strided_slice %0 {offsets = [0, 3], sizes = [8, 1], strides = [1, 1]} : vector<8x128xf32> to vector<8x1xf32>
    %37 = vector.broadcast %36 : vector<8x1xf32> to vector<8x512xf32>
    %38 = arith.mulf %37, %13 : vector<8x512xf32>
    %39 = vector.extract_strided_slice %0 {offsets = [0, 6], sizes = [8, 1], strides = [1, 1]} : vector<8x128xf32> to vector<8x1xf32>
    %40 = vector.broadcast %39 : vector<8x1xf32> to vector<8x512xf32>
    %41 = arith.addf %38, %40 : vector<8x512xf32>
    %42 = vector.extract_strided_slice %0 {offsets = [0, 9], sizes = [8, 1], strides = [1, 1]} : vector<8x128xf32> to vector<8x1xf32>
    %43 = math.tanh %41 : vector<8x512xf32>
    %44 = vector.broadcast %42 : vector<8x1xf32> to vector<8x512xf32>
    %45 = arith.mulf %44, %43 : vector<8x512xf32>
    %46 = arith.addf %41, %45 : vector<8x512xf32>
    %47 = vector.extract_strided_slice %0 {offsets = [0, 10], sizes = [8, 1], strides = [1, 1]} : vector<8x128xf32> to vector<8x1xf32>
    %48 = vector.broadcast %47 : vector<8x1xf32> to vector<8x512xf32>
    %49 = arith.mulf %48, %24 : vector<8x512xf32>
    %50 = vector.extract_strided_slice %0 {offsets = [0, 11], sizes = [8, 1], strides = [1, 1]} : vector<8x128xf32> to vector<8x1xf32>
    %51 = vector.broadcast %50 : vector<8x1xf32> to vector<8x512xf32>
    %52 = arith.mulf %51, %35 : vector<8x512xf32>
    %53 = arith.addf %49, %52 : vector<8x512xf32>
    %54 = vector.extract_strided_slice %0 {offsets = [0, 12], sizes = [8, 1], strides = [1, 1]} : vector<8x128xf32> to vector<8x1xf32>
    %55 = vector.broadcast %54 : vector<8x1xf32> to vector<8x512xf32>
    %56 = arith.mulf %55, %46 : vector<8x512xf32>
    %57 = arith.addf %53, %56 : vector<8x512xf32>
    %58 = vector.extract_strided_slice %0 {offsets = [0, 19], sizes = [8, 1], strides = [1, 1]} : vector<8x128xf32> to vector<8x1xf32>
    %59 = vector.broadcast %58 : vector<8x1xf32> to vector<8x512xf32>
    %60 = arith.addf %57, %59 : vector<8x512xf32>
    %61 = vector.extract_strided_slice %0 {offsets = [0, 22], sizes = [8, 1], strides = [1, 1]} : vector<8x128xf32> to vector<8x1xf32>
    %62 = math.tanh %60 : vector<8x512xf32>
    %63 = vector.broadcast %61 : vector<8x1xf32> to vector<8x512xf32>
    %64 = arith.mulf %63, %62 : vector<8x512xf32>
    %65 = arith.addf %60, %64 : vector<8x512xf32>
    %66 = vector.extract_strided_slice %0 {offsets = [0, 13], sizes = [8, 1], strides = [1, 1]} : vector<8x128xf32> to vector<8x1xf32>
    %67 = vector.broadcast %66 : vector<8x1xf32> to vector<8x512xf32>
    %68 = arith.mulf %67, %24 : vector<8x512xf32>
    %69 = vector.extract_strided_slice %0 {offsets = [0, 14], sizes = [8, 1], strides = [1, 1]} : vector<8x128xf32> to vector<8x1xf32>
    %70 = vector.broadcast %69 : vector<8x1xf32> to vector<8x512xf32>
    %71 = arith.mulf %70, %35 : vector<8x512xf32>
    %72 = arith.addf %68, %71 : vector<8x512xf32>
    %73 = vector.extract_strided_slice %0 {offsets = [0, 15], sizes = [8, 1], strides = [1, 1]} : vector<8x128xf32> to vector<8x1xf32>
    %74 = vector.broadcast %73 : vector<8x1xf32> to vector<8x512xf32>
    %75 = arith.mulf %74, %46 : vector<8x512xf32>
    %76 = arith.addf %72, %75 : vector<8x512xf32>
    %77 = vector.extract_strided_slice %0 {offsets = [0, 20], sizes = [8, 1], strides = [1, 1]} : vector<8x128xf32> to vector<8x1xf32>
    %78 = vector.broadcast %77 : vector<8x1xf32> to vector<8x512xf32>
    %79 = arith.addf %76, %78 : vector<8x512xf32>
    %80 = vector.extract_strided_slice %0 {offsets = [0, 23], sizes = [8, 1], strides = [1, 1]} : vector<8x128xf32> to vector<8x1xf32>
    %81 = math.tanh %79 : vector<8x512xf32>
    %82 = vector.broadcast %80 : vector<8x1xf32> to vector<8x512xf32>
    %83 = arith.mulf %82, %81 : vector<8x512xf32>
    %84 = arith.addf %79, %83 : vector<8x512xf32>
    %85 = vector.extract_strided_slice %0 {offsets = [0, 16], sizes = [8, 1], strides = [1, 1]} : vector<8x128xf32> to vector<8x1xf32>
    %86 = vector.broadcast %85 : vector<8x1xf32> to vector<8x512xf32>
    %87 = arith.mulf %86, %24 : vector<8x512xf32>
    %88 = vector.extract_strided_slice %0 {offsets = [0, 17], sizes = [8, 1], strides = [1, 1]} : vector<8x128xf32> to vector<8x1xf32>
    %89 = vector.broadcast %88 : vector<8x1xf32> to vector<8x512xf32>
    %90 = arith.mulf %89, %35 : vector<8x512xf32>
    %91 = arith.addf %87, %90 : vector<8x512xf32>
    %92 = vector.extract_strided_slice %0 {offsets = [0, 18], sizes = [8, 1], strides = [1, 1]} : vector<8x128xf32> to vector<8x1xf32>
    %93 = vector.broadcast %92 : vector<8x1xf32> to vector<8x512xf32>
    %94 = arith.mulf %93, %46 : vector<8x512xf32>
    %95 = arith.addf %91, %94 : vector<8x512xf32>
    %96 = vector.extract_strided_slice %0 {offsets = [0, 21], sizes = [8, 1], strides = [1, 1]} : vector<8x128xf32> to vector<8x1xf32>
    %97 = vector.broadcast %96 : vector<8x1xf32> to vector<8x512xf32>
    %98 = arith.addf %95, %97 : vector<8x512xf32>
    %99 = vector.extract_strided_slice %0 {offsets = [0, 24], sizes = [8, 1], strides = [1, 1]} : vector<8x128xf32> to vector<8x1xf32>
    %100 = math.tanh %98 : vector<8x512xf32>
    %101 = vector.broadcast %99 : vector<8x1xf32> to vector<8x512xf32>
    %102 = arith.mulf %101, %100 : vector<8x512xf32>
    %103 = arith.addf %98, %102 : vector<8x512xf32>
    %104 = vector.extract_strided_slice %0 {offsets = [0, 25], sizes = [8, 1], strides = [1, 1]} : vector<8x128xf32> to vector<8x1xf32>
    %105 = vector.broadcast %104 : vector<8x1xf32> to vector<8x512xf32>
    %106 = arith.mulf %105, %65 : vector<8x512xf32>
    %107 = vector.extract_strided_slice %0 {offsets = [0, 26], sizes = [8, 1], strides = [1, 1]} : vector<8x128xf32> to vector<8x1xf32>
    %108 = vector.broadcast %107 : vector<8x1xf32> to vector<8x512xf32>
    %109 = arith.mulf %108, %84 : vector<8x512xf32>
    %110 = arith.addf %106, %109 : vector<8x512xf32>
    %111 = vector.extract_strided_slice %0 {offsets = [0, 27], sizes = [8, 1], strides = [1, 1]} : vector<8x128xf32> to vector<8x1xf32>
    %112 = vector.broadcast %111 : vector<8x1xf32> to vector<8x512xf32>
    %113 = arith.mulf %112, %103 : vector<8x512xf32>
    %114 = arith.addf %110, %113 : vector<8x512xf32>
    %115 = vector.extract_strided_slice %0 {offsets = [0, 34], sizes = [8, 1], strides = [1, 1]} : vector<8x128xf32> to vector<8x1xf32>
    %116 = vector.broadcast %115 : vector<8x1xf32> to vector<8x512xf32>
    %117 = arith.addf %114, %116 : vector<8x512xf32>
    %118 = vector.extract_strided_slice %0 {offsets = [0, 37], sizes = [8, 1], strides = [1, 1]} : vector<8x128xf32> to vector<8x1xf32>
    %119 = math.tanh %117 : vector<8x512xf32>
    %120 = vector.broadcast %118 : vector<8x1xf32> to vector<8x512xf32>
    %121 = arith.mulf %120, %119 : vector<8x512xf32>
    %122 = arith.addf %117, %121 : vector<8x512xf32>
    %123 = vector.extract_strided_slice %0 {offsets = [0, 28], sizes = [8, 1], strides = [1, 1]} : vector<8x128xf32> to vector<8x1xf32>
    %124 = vector.broadcast %123 : vector<8x1xf32> to vector<8x512xf32>
    %125 = arith.mulf %124, %65 : vector<8x512xf32>
    %126 = vector.extract_strided_slice %0 {offsets = [0, 29], sizes = [8, 1], strides = [1, 1]} : vector<8x128xf32> to vector<8x1xf32>
    %127 = vector.broadcast %126 : vector<8x1xf32> to vector<8x512xf32>
    %128 = arith.mulf %127, %84 : vector<8x512xf32>
    %129 = arith.addf %125, %128 : vector<8x512xf32>
    %130 = vector.extract_strided_slice %0 {offsets = [0, 30], sizes = [8, 1], strides = [1, 1]} : vector<8x128xf32> to vector<8x1xf32>
    %131 = vector.broadcast %130 : vector<8x1xf32> to vector<8x512xf32>
    %132 = arith.mulf %131, %103 : vector<8x512xf32>
    %133 = arith.addf %129, %132 : vector<8x512xf32>
    %134 = vector.extract_strided_slice %0 {offsets = [0, 35], sizes = [8, 1], strides = [1, 1]} : vector<8x128xf32> to vector<8x1xf32>
    %135 = vector.broadcast %134 : vector<8x1xf32> to vector<8x512xf32>
    %136 = arith.addf %133, %135 : vector<8x512xf32>
    %137 = vector.extract_strided_slice %0 {offsets = [0, 38], sizes = [8, 1], strides = [1, 1]} : vector<8x128xf32> to vector<8x1xf32>
    %138 = math.tanh %136 : vector<8x512xf32>
    %139 = vector.broadcast %137 : vector<8x1xf32> to vector<8x512xf32>
    %140 = arith.mulf %139, %138 : vector<8x512xf32>
    %141 = arith.addf %136, %140 : vector<8x512xf32>
    %142 = vector.extract_strided_slice %0 {offsets = [0, 31], sizes = [8, 1], strides = [1, 1]} : vector<8x128xf32> to vector<8x1xf32>
    %143 = vector.broadcast %142 : vector<8x1xf32> to vector<8x512xf32>
    %144 = arith.mulf %143, %65 : vector<8x512xf32>
    %145 = vector.extract_strided_slice %0 {offsets = [0, 32], sizes = [8, 1], strides = [1, 1]} : vector<8x128xf32> to vector<8x1xf32>
    %146 = vector.broadcast %145 : vector<8x1xf32> to vector<8x512xf32>
    %147 = arith.mulf %146, %84 : vector<8x512xf32>
    %148 = arith.addf %144, %147 : vector<8x512xf32>
    %149 = vector.extract_strided_slice %0 {offsets = [0, 33], sizes = [8, 1], strides = [1, 1]} : vector<8x128xf32> to vector<8x1xf32>
    %150 = vector.broadcast %149 : vector<8x1xf32> to vector<8x512xf32>
    %151 = arith.mulf %150, %103 : vector<8x512xf32>
    %152 = arith.addf %148, %151 : vector<8x512xf32>
    %153 = vector.extract_strided_slice %0 {offsets = [0, 36], sizes = [8, 1], strides = [1, 1]} : vector<8x128xf32> to vector<8x1xf32>
    %154 = vector.broadcast %153 : vector<8x1xf32> to vector<8x512xf32>
    %155 = arith.addf %152, %154 : vector<8x512xf32>
    %156 = vector.extract_strided_slice %0 {offsets = [0, 39], sizes = [8, 1], strides = [1, 1]} : vector<8x128xf32> to vector<8x1xf32>
    %157 = math.tanh %155 : vector<8x512xf32>
    %158 = vector.broadcast %156 : vector<8x1xf32> to vector<8x512xf32>
    %159 = arith.mulf %158, %157 : vector<8x512xf32>
    %160 = arith.addf %155, %159 : vector<8x512xf32>
    %161 = vector.extract_strided_slice %0 {offsets = [0, 40], sizes = [8, 1], strides = [1, 1]} : vector<8x128xf32> to vector<8x1xf32>
    %162 = vector.broadcast %161 : vector<8x1xf32> to vector<8x512xf32>
    %163 = arith.mulf %162, %122 : vector<8x512xf32>
    %164 = vector.extract_strided_slice %0 {offsets = [0, 41], sizes = [8, 1], strides = [1, 1]} : vector<8x128xf32> to vector<8x1xf32>
    %165 = vector.broadcast %164 : vector<8x1xf32> to vector<8x512xf32>
    %166 = arith.mulf %165, %141 : vector<8x512xf32>
    %167 = arith.addf %163, %166 : vector<8x512xf32>
    %168 = vector.extract_strided_slice %0 {offsets = [0, 42], sizes = [8, 1], strides = [1, 1]} : vector<8x128xf32> to vector<8x1xf32>
    %169 = vector.broadcast %168 : vector<8x1xf32> to vector<8x512xf32>
    %170 = arith.mulf %169, %160 : vector<8x512xf32>
    %171 = arith.addf %167, %170 : vector<8x512xf32>
    %172 = vector.extract_strided_slice %0 {offsets = [0, 43], sizes = [8, 1], strides = [1, 1]} : vector<8x128xf32> to vector<8x1xf32>
    %173 = vector.broadcast %172 : vector<8x1xf32> to vector<8x512xf32>
    %174 = arith.addf %171, %173 : vector<8x512xf32>
    %175 = vector.extract_strided_slice %0 {offsets = [0, 44], sizes = [8, 1], strides = [1, 1]} : vector<8x128xf32> to vector<8x1xf32>
    %176 = math.tanh %174 : vector<8x512xf32>
    %177 = vector.broadcast %175 : vector<8x1xf32> to vector<8x512xf32>
    %178 = arith.mulf %177, %176 : vector<8x512xf32>
    %179 = arith.addf %174, %178 : vector<8x512xf32>
    %cst_7 = arith.constant 5.000000e-01 : f32
    %180 = vector.broadcast %cst_7 : f32 to vector<8x512xf32>
    %181 = arith.addf %8, %180 : vector<8x512xf32>
    %182 = vector.extract_strided_slice %0 {offsets = [0, 1], sizes = [8, 1], strides = [1, 1]} : vector<8x128xf32> to vector<8x1xf32>
    %183 = vector.broadcast %182 : vector<8x1xf32> to vector<8x512xf32>
    %184 = arith.mulf %183, %181 : vector<8x512xf32>
    %185 = vector.extract_strided_slice %0 {offsets = [0, 4], sizes = [8, 1], strides = [1, 1]} : vector<8x128xf32> to vector<8x1xf32>
    %186 = vector.broadcast %185 : vector<8x1xf32> to vector<8x512xf32>
    %187 = arith.addf %184, %186 : vector<8x512xf32>
    %188 = vector.extract_strided_slice %0 {offsets = [0, 7], sizes = [8, 1], strides = [1, 1]} : vector<8x128xf32> to vector<8x1xf32>
    %189 = math.tanh %187 : vector<8x512xf32>
    %190 = vector.broadcast %188 : vector<8x1xf32> to vector<8x512xf32>
    %191 = arith.mulf %190, %189 : vector<8x512xf32>
    %192 = arith.addf %187, %191 : vector<8x512xf32>
    %193 = vector.extract_strided_slice %0 {offsets = [0, 2], sizes = [8, 1], strides = [1, 1]} : vector<8x128xf32> to vector<8x1xf32>
    %194 = vector.broadcast %193 : vector<8x1xf32> to vector<8x512xf32>
    %195 = arith.mulf %194, %181 : vector<8x512xf32>
    %196 = vector.extract_strided_slice %0 {offsets = [0, 5], sizes = [8, 1], strides = [1, 1]} : vector<8x128xf32> to vector<8x1xf32>
    %197 = vector.broadcast %196 : vector<8x1xf32> to vector<8x512xf32>
    %198 = arith.addf %195, %197 : vector<8x512xf32>
    %199 = vector.extract_strided_slice %0 {offsets = [0, 8], sizes = [8, 1], strides = [1, 1]} : vector<8x128xf32> to vector<8x1xf32>
    %200 = math.tanh %198 : vector<8x512xf32>
    %201 = vector.broadcast %199 : vector<8x1xf32> to vector<8x512xf32>
    %202 = arith.mulf %201, %200 : vector<8x512xf32>
    %203 = arith.addf %198, %202 : vector<8x512xf32>
    %204 = vector.extract_strided_slice %0 {offsets = [0, 3], sizes = [8, 1], strides = [1, 1]} : vector<8x128xf32> to vector<8x1xf32>
    %205 = vector.broadcast %204 : vector<8x1xf32> to vector<8x512xf32>
    %206 = arith.mulf %205, %181 : vector<8x512xf32>
    %207 = vector.extract_strided_slice %0 {offsets = [0, 6], sizes = [8, 1], strides = [1, 1]} : vector<8x128xf32> to vector<8x1xf32>
    %208 = vector.broadcast %207 : vector<8x1xf32> to vector<8x512xf32>
    %209 = arith.addf %206, %208 : vector<8x512xf32>
    %210 = vector.extract_strided_slice %0 {offsets = [0, 9], sizes = [8, 1], strides = [1, 1]} : vector<8x128xf32> to vector<8x1xf32>
    %211 = math.tanh %209 : vector<8x512xf32>
    %212 = vector.broadcast %210 : vector<8x1xf32> to vector<8x512xf32>
    %213 = arith.mulf %212, %211 : vector<8x512xf32>
    %214 = arith.addf %209, %213 : vector<8x512xf32>
    %215 = vector.extract_strided_slice %0 {offsets = [0, 10], sizes = [8, 1], strides = [1, 1]} : vector<8x128xf32> to vector<8x1xf32>
    %216 = vector.broadcast %215 : vector<8x1xf32> to vector<8x512xf32>
    %217 = arith.mulf %216, %192 : vector<8x512xf32>
    %218 = vector.extract_strided_slice %0 {offsets = [0, 11], sizes = [8, 1], strides = [1, 1]} : vector<8x128xf32> to vector<8x1xf32>
    %219 = vector.broadcast %218 : vector<8x1xf32> to vector<8x512xf32>
    %220 = arith.mulf %219, %203 : vector<8x512xf32>
    %221 = arith.addf %217, %220 : vector<8x512xf32>
    %222 = vector.extract_strided_slice %0 {offsets = [0, 12], sizes = [8, 1], strides = [1, 1]} : vector<8x128xf32> to vector<8x1xf32>
    %223 = vector.broadcast %222 : vector<8x1xf32> to vector<8x512xf32>
    %224 = arith.mulf %223, %214 : vector<8x512xf32>
    %225 = arith.addf %221, %224 : vector<8x512xf32>
    %226 = vector.extract_strided_slice %0 {offsets = [0, 19], sizes = [8, 1], strides = [1, 1]} : vector<8x128xf32> to vector<8x1xf32>
    %227 = vector.broadcast %226 : vector<8x1xf32> to vector<8x512xf32>
    %228 = arith.addf %225, %227 : vector<8x512xf32>
    %229 = vector.extract_strided_slice %0 {offsets = [0, 22], sizes = [8, 1], strides = [1, 1]} : vector<8x128xf32> to vector<8x1xf32>
    %230 = math.tanh %228 : vector<8x512xf32>
    %231 = vector.broadcast %229 : vector<8x1xf32> to vector<8x512xf32>
    %232 = arith.mulf %231, %230 : vector<8x512xf32>
    %233 = arith.addf %228, %232 : vector<8x512xf32>
    %234 = vector.extract_strided_slice %0 {offsets = [0, 13], sizes = [8, 1], strides = [1, 1]} : vector<8x128xf32> to vector<8x1xf32>
    %235 = vector.broadcast %234 : vector<8x1xf32> to vector<8x512xf32>
    %236 = arith.mulf %235, %192 : vector<8x512xf32>
    %237 = vector.extract_strided_slice %0 {offsets = [0, 14], sizes = [8, 1], strides = [1, 1]} : vector<8x128xf32> to vector<8x1xf32>
    %238 = vector.broadcast %237 : vector<8x1xf32> to vector<8x512xf32>
    %239 = arith.mulf %238, %203 : vector<8x512xf32>
    %240 = arith.addf %236, %239 : vector<8x512xf32>
    %241 = vector.extract_strided_slice %0 {offsets = [0, 15], sizes = [8, 1], strides = [1, 1]} : vector<8x128xf32> to vector<8x1xf32>
    %242 = vector.broadcast %241 : vector<8x1xf32> to vector<8x512xf32>
    %243 = arith.mulf %242, %214 : vector<8x512xf32>
    %244 = arith.addf %240, %243 : vector<8x512xf32>
    %245 = vector.extract_strided_slice %0 {offsets = [0, 20], sizes = [8, 1], strides = [1, 1]} : vector<8x128xf32> to vector<8x1xf32>
    %246 = vector.broadcast %245 : vector<8x1xf32> to vector<8x512xf32>
    %247 = arith.addf %244, %246 : vector<8x512xf32>
    %248 = vector.extract_strided_slice %0 {offsets = [0, 23], sizes = [8, 1], strides = [1, 1]} : vector<8x128xf32> to vector<8x1xf32>
    %249 = math.tanh %247 : vector<8x512xf32>
    %250 = vector.broadcast %248 : vector<8x1xf32> to vector<8x512xf32>
    %251 = arith.mulf %250, %249 : vector<8x512xf32>
    %252 = arith.addf %247, %251 : vector<8x512xf32>
    %253 = vector.extract_strided_slice %0 {offsets = [0, 16], sizes = [8, 1], strides = [1, 1]} : vector<8x128xf32> to vector<8x1xf32>
    %254 = vector.broadcast %253 : vector<8x1xf32> to vector<8x512xf32>
    %255 = arith.mulf %254, %192 : vector<8x512xf32>
    %256 = vector.extract_strided_slice %0 {offsets = [0, 17], sizes = [8, 1], strides = [1, 1]} : vector<8x128xf32> to vector<8x1xf32>
    %257 = vector.broadcast %256 : vector<8x1xf32> to vector<8x512xf32>
    %258 = arith.mulf %257, %203 : vector<8x512xf32>
    %259 = arith.addf %255, %258 : vector<8x512xf32>
    %260 = vector.extract_strided_slice %0 {offsets = [0, 18], sizes = [8, 1], strides = [1, 1]} : vector<8x128xf32> to vector<8x1xf32>
    %261 = vector.broadcast %260 : vector<8x1xf32> to vector<8x512xf32>
    %262 = arith.mulf %261, %214 : vector<8x512xf32>
    %263 = arith.addf %259, %262 : vector<8x512xf32>
    %264 = vector.extract_strided_slice %0 {offsets = [0, 21], sizes = [8, 1], strides = [1, 1]} : vector<8x128xf32> to vector<8x1xf32>
    %265 = vector.broadcast %264 : vector<8x1xf32> to vector<8x512xf32>
    %266 = arith.addf %263, %265 : vector<8x512xf32>
    %267 = vector.extract_strided_slice %0 {offsets = [0, 24], sizes = [8, 1], strides = [1, 1]} : vector<8x128xf32> to vector<8x1xf32>
    %268 = math.tanh %266 : vector<8x512xf32>
    %269 = vector.broadcast %267 : vector<8x1xf32> to vector<8x512xf32>
    %270 = arith.mulf %269, %268 : vector<8x512xf32>
    %271 = arith.addf %266, %270 : vector<8x512xf32>
    %272 = vector.extract_strided_slice %0 {offsets = [0, 25], sizes = [8, 1], strides = [1, 1]} : vector<8x128xf32> to vector<8x1xf32>
    %273 = vector.broadcast %272 : vector<8x1xf32> to vector<8x512xf32>
    %274 = arith.mulf %273, %233 : vector<8x512xf32>
    %275 = vector.extract_strided_slice %0 {offsets = [0, 26], sizes = [8, 1], strides = [1, 1]} : vector<8x128xf32> to vector<8x1xf32>
    %276 = vector.broadcast %275 : vector<8x1xf32> to vector<8x512xf32>
    %277 = arith.mulf %276, %252 : vector<8x512xf32>
    %278 = arith.addf %274, %277 : vector<8x512xf32>
    %279 = vector.extract_strided_slice %0 {offsets = [0, 27], sizes = [8, 1], strides = [1, 1]} : vector<8x128xf32> to vector<8x1xf32>
    %280 = vector.broadcast %279 : vector<8x1xf32> to vector<8x512xf32>
    %281 = arith.mulf %280, %271 : vector<8x512xf32>
    %282 = arith.addf %278, %281 : vector<8x512xf32>
    %283 = vector.extract_strided_slice %0 {offsets = [0, 34], sizes = [8, 1], strides = [1, 1]} : vector<8x128xf32> to vector<8x1xf32>
    %284 = vector.broadcast %283 : vector<8x1xf32> to vector<8x512xf32>
    %285 = arith.addf %282, %284 : vector<8x512xf32>
    %286 = vector.extract_strided_slice %0 {offsets = [0, 37], sizes = [8, 1], strides = [1, 1]} : vector<8x128xf32> to vector<8x1xf32>
    %287 = math.tanh %285 : vector<8x512xf32>
    %288 = vector.broadcast %286 : vector<8x1xf32> to vector<8x512xf32>
    %289 = arith.mulf %288, %287 : vector<8x512xf32>
    %290 = arith.addf %285, %289 : vector<8x512xf32>
    %291 = vector.extract_strided_slice %0 {offsets = [0, 28], sizes = [8, 1], strides = [1, 1]} : vector<8x128xf32> to vector<8x1xf32>
    %292 = vector.broadcast %291 : vector<8x1xf32> to vector<8x512xf32>
    %293 = arith.mulf %292, %233 : vector<8x512xf32>
    %294 = vector.extract_strided_slice %0 {offsets = [0, 29], sizes = [8, 1], strides = [1, 1]} : vector<8x128xf32> to vector<8x1xf32>
    %295 = vector.broadcast %294 : vector<8x1xf32> to vector<8x512xf32>
    %296 = arith.mulf %295, %252 : vector<8x512xf32>
    %297 = arith.addf %293, %296 : vector<8x512xf32>
    %298 = vector.extract_strided_slice %0 {offsets = [0, 30], sizes = [8, 1], strides = [1, 1]} : vector<8x128xf32> to vector<8x1xf32>
    %299 = vector.broadcast %298 : vector<8x1xf32> to vector<8x512xf32>
    %300 = arith.mulf %299, %271 : vector<8x512xf32>
    %301 = arith.addf %297, %300 : vector<8x512xf32>
    %302 = vector.extract_strided_slice %0 {offsets = [0, 35], sizes = [8, 1], strides = [1, 1]} : vector<8x128xf32> to vector<8x1xf32>
    %303 = vector.broadcast %302 : vector<8x1xf32> to vector<8x512xf32>
    %304 = arith.addf %301, %303 : vector<8x512xf32>
    %305 = vector.extract_strided_slice %0 {offsets = [0, 38], sizes = [8, 1], strides = [1, 1]} : vector<8x128xf32> to vector<8x1xf32>
    %306 = math.tanh %304 : vector<8x512xf32>
    %307 = vector.broadcast %305 : vector<8x1xf32> to vector<8x512xf32>
    %308 = arith.mulf %307, %306 : vector<8x512xf32>
    %309 = arith.addf %304, %308 : vector<8x512xf32>
    %310 = vector.extract_strided_slice %0 {offsets = [0, 31], sizes = [8, 1], strides = [1, 1]} : vector<8x128xf32> to vector<8x1xf32>
    %311 = vector.broadcast %310 : vector<8x1xf32> to vector<8x512xf32>
    %312 = arith.mulf %311, %233 : vector<8x512xf32>
    %313 = vector.extract_strided_slice %0 {offsets = [0, 32], sizes = [8, 1], strides = [1, 1]} : vector<8x128xf32> to vector<8x1xf32>
    %314 = vector.broadcast %313 : vector<8x1xf32> to vector<8x512xf32>
    %315 = arith.mulf %314, %252 : vector<8x512xf32>
    %316 = arith.addf %312, %315 : vector<8x512xf32>
    %317 = vector.extract_strided_slice %0 {offsets = [0, 33], sizes = [8, 1], strides = [1, 1]} : vector<8x128xf32> to vector<8x1xf32>
    %318 = vector.broadcast %317 : vector<8x1xf32> to vector<8x512xf32>
    %319 = arith.mulf %318, %271 : vector<8x512xf32>
    %320 = arith.addf %316, %319 : vector<8x512xf32>
    %321 = vector.extract_strided_slice %0 {offsets = [0, 36], sizes = [8, 1], strides = [1, 1]} : vector<8x128xf32> to vector<8x1xf32>
    %322 = vector.broadcast %321 : vector<8x1xf32> to vector<8x512xf32>
    %323 = arith.addf %320, %322 : vector<8x512xf32>
    %324 = vector.extract_strided_slice %0 {offsets = [0, 39], sizes = [8, 1], strides = [1, 1]} : vector<8x128xf32> to vector<8x1xf32>
    %325 = math.tanh %323 : vector<8x512xf32>
    %326 = vector.broadcast %324 : vector<8x1xf32> to vector<8x512xf32>
    %327 = arith.mulf %326, %325 : vector<8x512xf32>
    %328 = arith.addf %323, %327 : vector<8x512xf32>
    %329 = vector.extract_strided_slice %0 {offsets = [0, 40], sizes = [8, 1], strides = [1, 1]} : vector<8x128xf32> to vector<8x1xf32>
    %330 = vector.broadcast %329 : vector<8x1xf32> to vector<8x512xf32>
    %331 = arith.mulf %330, %290 : vector<8x512xf32>
    %332 = vector.extract_strided_slice %0 {offsets = [0, 41], sizes = [8, 1], strides = [1, 1]} : vector<8x128xf32> to vector<8x1xf32>
    %333 = vector.broadcast %332 : vector<8x1xf32> to vector<8x512xf32>
    %334 = arith.mulf %333, %309 : vector<8x512xf32>
    %335 = arith.addf %331, %334 : vector<8x512xf32>
    %336 = vector.extract_strided_slice %0 {offsets = [0, 42], sizes = [8, 1], strides = [1, 1]} : vector<8x128xf32> to vector<8x1xf32>
    %337 = vector.broadcast %336 : vector<8x1xf32> to vector<8x512xf32>
    %338 = arith.mulf %337, %328 : vector<8x512xf32>
    %339 = arith.addf %335, %338 : vector<8x512xf32>
    %340 = vector.extract_strided_slice %0 {offsets = [0, 43], sizes = [8, 1], strides = [1, 1]} : vector<8x128xf32> to vector<8x1xf32>
    %341 = vector.broadcast %340 : vector<8x1xf32> to vector<8x512xf32>
    %342 = arith.addf %339, %341 : vector<8x512xf32>
    %343 = vector.extract_strided_slice %0 {offsets = [0, 44], sizes = [8, 1], strides = [1, 1]} : vector<8x128xf32> to vector<8x1xf32>
    %344 = math.tanh %342 : vector<8x512xf32>
    %345 = vector.broadcast %343 : vector<8x1xf32> to vector<8x512xf32>
    %346 = arith.mulf %345, %344 : vector<8x512xf32>
    %347 = arith.addf %342, %346 : vector<8x512xf32>
    %348 = arith.addf %179, %347 : vector<8x512xf32>
    %cst_8 = arith.constant 0.000000e+00 : f32
    %349 = vector.broadcast %cst_8 : f32 to vector<8x512xf32>
    %350 = arith.cmpf ogt, %348, %349 : vector<8x512xf32>
    %cst_9 = arith.constant 0.000000e+00 : f32
    %351 = vector.broadcast %cst_9 : f32 to vector<8x512xf32>
    %352 = arith.cmpf olt, %348, %351 : vector<8x512xf32>
    %cst_10 = arith.constant -1.000000e+00 : f32
    %cst_11 = arith.constant 0.000000e+00 : f32
    %353 = vector.broadcast %cst_10 : f32 to vector<8x512xf32>
    %354 = vector.broadcast %cst_11 : f32 to vector<8x512xf32>
    %355 = arith.select %352, %353, %354 : vector<8x512xi1>, vector<8x512xf32>
    %cst_12 = arith.constant 1.000000e+00 : f32
    %356 = vector.broadcast %cst_12 : f32 to vector<8x512xf32>
    %357 = arith.select %350, %356, %355 : vector<8x512xi1>, vector<8x512xf32>
    %358 = arith.mulf %357, %347 : vector<8x512xf32>
    %cst_13 = arith.constant -5.000000e-01 : f32
    %359 = vector.broadcast %cst_13 : f32 to vector<8x512xf32>
    %360 = arith.mulf %359, %358 : vector<8x512xf32>
    %361 = math.tanh %360 : vector<8x512xf32>
    %362 = arith.mulf %357, %179 : vector<8x512xf32>
    %cst_14 = arith.constant -5.000000e-01 : f32
    %363 = vector.broadcast %cst_14 : f32 to vector<8x512xf32>
    %364 = arith.mulf %363, %362 : vector<8x512xf32>
    %365 = math.tanh %364 : vector<8x512xf32>
    %366 = arith.subf %361, %365 : vector<8x512xf32>
    %367 = math.absf %366 : vector<8x512xf32>
    %cst_15 = arith.constant 5.000000e-01 : f32
    %368 = vector.broadcast %cst_15 : f32 to vector<8x512xf32>
    %369 = arith.mulf %368, %367 : vector<8x512xf32>
    %cst_16 = arith.constant 9.99999997E-7 : f32
    %370 = vector.broadcast %cst_16 : f32 to vector<8x512xf32>
    %371 = arith.maximumf %369, %370 : vector<8x512xf32>
    %c0_17 = arith.constant 0 : index
    %c0_18 = arith.constant 0 : index
    %c0_19 = arith.constant 0 : index
    %372 = vector.load %arg6[%c0_17, %c0_18, %c0_19] : memref<1x8x512xf32, #tpu.memory_space<vmem>>, vector<1x8x512xf32>
    %373 = vector.shape_cast %372 : vector<1x8x512xf32> to vector<8x512xf32>
    %374 = vector.shape_cast %371 : vector<8x512xf32> to vector<1x8x512xf32>
    tpu.vector_store %arg6[%c0_17, %c0_18, %c0_19], %374 {strides = array<i32>} : memref<1x8x512xf32, #tpu.memory_space<vmem>>, vector<1x8x512xf32>,
    return
  }
  func.func @transform_0(%arg0: i32, %arg1: i32, %arg2: i32) -> (i32, i32, i32) {
    %c0_i32 = arith.constant 0 : i32
    return %arg1, %arg2, %arg0 : i32, i32, i32
  }
  func.func @transform_1(%arg0: i32, %arg1: i32, %arg2: i32) -> (i32, i32) {
    %c0_i32 = arith.constant 0 : i32
    %c0_i32_0 = arith.constant 0 : i32
    return %arg2, %c0_i32 : i32, i32
  }
  func.func @transform_2(%arg0: i32, %arg1: i32, %arg2: i32) -> (i32, i32, i32) {
    %c0_i32 = arith.constant 0 : i32
    return %arg1, %arg2, %arg0 : i32, i32, i32
  }
  func.func @transform_3(%arg0: i32, %arg1: i32, %arg2: i32) -> (i32, i32, i32) {
    %c0_i32 = arith.constant 0 : i32
    return %arg1, %arg2, %arg0 : i32, i32, i32
  }
}

</mosaic_0001>

<llo_original>
// kernel: full_factorized_forward.1
$region0: #{full_factorized_forward.1}
  #allocation0 [shape = 'u32[]', space=smem, size = 0x4, offset = 0x4, fixed_abs, tag = 'smem constant byte address 0x4 - core index']
  #allocation1 [shape = 'u32[144,128]{1,0:T(1,128)}', space=vmem, size = 0x12000, scoped, tag = 'internal scratch']
  %s0 = inlined_call_operand.vmem [shape: f32[3,8,512], index: 0, kind: input, shape index: {}]
  %s1 = inlined_call_operand.vmem [shape: f32[8,128], index: 1, kind: input, shape index: {}]
  %s2 = inlined_call_operand.vmem [shape: f32[3,8,512], index: 2, kind: output, shape index: {0}]
  %s3 = inlined_call_operand.vmem [shape: f32[3,8,512], index: 3, kind: output, shape index: {1}]
  %4 = xla_tuple %s2, %s3
  %s5 = sld [smem:[#allocation0]]
  $region49: #{full_factorized_forward.1} parent=0
    _
  %s7 = ssub.s32 1, %s5
  %s8 = scalar_select 0, %s7, %s5
  loop: start=0, step=1, limit=5
  $region2: #{full_factorized_forward.1} parent=0 // loop_pre_header
    _
  $region3: #{full_factorized_forward.1} parent=0 // loop_header
    %s10 = sphi 0, %s14
    %p11 = scmp.ge.s32.totalorder %s10, 5
    %s17 = sphi 0, %s36
    %s18 = sphi 0, %s32
    %s19 = sphi 0, %s28
    %s20 = sphi 0, %s17
    %s21 = sphi 0, %s18
    %s22 = sphi 0, %s19
    %s23 = sphi 0, %s20
    %s24 = sphi 0, %s21
    %s25 = sphi 0, %s22
    %s43 = sphi 0, %s45
    %s46 = sphi 0, %s43
    %s47 = sphi 0, %s46
    %s63 = sphi 0, %s47
    %s69 = sphi 0, %s71
    %s72 = sphi 0, %s69
    %s73 = sphi 0, %s72
    %s89 = sphi 0, %s73
    %s99 = sphi 0, %s101
    %s102 = sphi 0, %s99
    %s103 = sphi 0, %s102
    %s119 = sphi 0, %s103
    %s129 = sphi 0, %s131
    %s132 = sphi 0, %s129
    %s133 = sphi 0, %s132
    %s149 = sphi 0, %s133
  $region4: #{full_factorized_forward.1} parent=0 // loop_header_branch
    %13 = sbr.rel (%p11) target = $region8
  $region5: #{full_factorized_forward.1} parent=0 // loop_body
    %s15 = ssub.s32 %s10, 1
    %s16 = ssub.s32 %s10, 2
    %s26 = sadd.s32 1, %s19
    %p27 = scmp.ge.s32.totalorder %s26, 1
    %s28 = scalar_select %p27, 0, %s26
    %s29 = sadd.s32 1, %s18
    %s30 = scalar_select %p27, %s29, %s18
    %p31 = scmp.ge.s32.totalorder %s30, 3
    %s32 = scalar_select %p31, 0, %s30
    %s33 = sadd.s32 1, %s17
    %s34 = scalar_select %p31, %s33, %s17
    %p35 = scmp.ge.s32.totalorder %s34, 1
    %s36 = scalar_select %p35, 0, %s34
    %s37 = ssub.s32 %s18, %s32
    %s38 = ssub.s32 %s19, %s28
    %s39 = sor.u32 %s37, %s38
    %s40 = ssub.s32 %s17, %s36
    %s41 = sor.u32 %s39, %s40
    %p42 = scmp.eq.s32.totalorder %s41, 0
    %s44 = sadd.s32 %s43, 1
    %s45 = scalar_select %p42, %s43, %s44
    %p48 = pneg %p42
    %p49 = scmp.eq.s32.totalorder %s10, 2
    %p50 = por %p48, %p49
    %p51 = scmp.ne.s32.totalorder %s43, %s46
    %p52 = scmp.eq.s32.totalorder %s10, 0
    %p53 = por %p51, %p52
    %p54 = scmp.ne.s32.totalorder %s43, %s46
    %p55 = scmp.eq.s32.totalorder %s15, 2
    %p56 = por %p54, %p55
    %p57 = scmp.ne.s32.totalorder %s46, %s47
    %p58 = scmp.eq.s32.totalorder %s15, 0
    %p59 = por %p57, %p58
    %p60 = scmp.ne.s32.totalorder %s46, %s47
    %p61 = scmp.eq.s32.totalorder %s16, 2
    %p62 = por %p60, %p61
    %p64 = scmp.ne.s32.totalorder %s47, %s63
    %p65 = scmp.eq.s32.totalorder %s16, 0
    %p66 = por %p64, %p65
    %s67 = ssub.s32 %s19, %s28
    %p68 = scmp.eq.s32.totalorder %s67, 0
    %s70 = sadd.s32 %s69, 1
    %s71 = scalar_select %p68, %s69, %s70
    %p74 = pneg %p68
    %p75 = scmp.eq.s32.totalorder %s10, 2
    %p76 = por %p74, %p75
    %p77 = scmp.ne.s32.totalorder %s69, %s72
    %p78 = scmp.eq.s32.totalorder %s10, 0
    %p79 = por %p77, %p78
    %p80 = scmp.ne.s32.totalorder %s69, %s72
    %p81 = scmp.eq.s32.totalorder %s15, 2
    %p82 = por %p80, %p81
    %p83 = scmp.ne.s32.totalorder %s72, %s73
    %p84 = scmp.eq.s32.totalorder %s15, 0
    %p85 = por %p83, %p84
    %p86 = scmp.ne.s32.totalorder %s72, %s73
    %p87 = scmp.eq.s32.totalorder %s16, 2
    %p88 = por %p86, %p87
    %p90 = scmp.ne.s32.totalorder %s73, %s89
    %p91 = scmp.eq.s32.totalorder %s16, 0
    %p92 = por %p90, %p91
    %s93 = ssub.s32 %s18, %s32
    %s94 = ssub.s32 %s19, %s28
    %s95 = sor.u32 %s93, %s94
    %s96 = ssub.s32 %s17, %s36
    %s97 = sor.u32 %s95, %s96
    %p98 = scmp.eq.s32.totalorder %s97, 0
    %s100 = sadd.s32 %s99, 1
    %s101 = scalar_select %p98, %s99, %s100
    %p104 = pneg %p98
    %p105 = scmp.eq.s32.totalorder %s10, 2
    %p106 = por %p104, %p105
    %p107 = scmp.ne.s32.totalorder %s99, %s102
    %p108 = scmp.eq.s32.totalorder %s10, 0
    %p109 = por %p107, %p108
    %p110 = scmp.ne.s32.totalorder %s99, %s102
    %p111 = scmp.eq.s32.totalorder %s15, 2
    %p112 = por %p110, %p111
    %p113 = scmp.ne.s32.totalorder %s102, %s103
    %p114 = scmp.eq.s32.totalorder %s15, 0
    %p115 = por %p113, %p114
    %p116 = scmp.ne.s32.totalorder %s102, %s103
    %p117 = scmp.eq.s32.totalorder %s16, 2
    %p118 = por %p116, %p117
    %p120 = scmp.ne.s32.totalorder %s103, %s119
    %p121 = scmp.eq.s32.totalorder %s16, 0
    %p122 = por %p120, %p121
    %s123 = ssub.s32 %s18, %s32
    %s124 = ssub.s32 %s19, %s28
    %s125 = sor.u32 %s123, %s124
    %s126 = ssub.s32 %s17, %s36
    %s127 = sor.u32 %s125, %s126
    %p128 = scmp.eq.s32.totalorder %s127, 0
    %s130 = sadd.s32 %s129, 1
    %s131 = scalar_select %p128, %s129, %s130
    %p134 = pneg %p128
    %p135 = scmp.eq.s32.totalorder %s10, 2
    %p136 = por %p134, %p135
    %p137 = scmp.ne.s32.totalorder %s129, %s132
    %p138 = scmp.eq.s32.totalorder %s10, 0
    %p139 = por %p137, %p138
    %p140 = scmp.ne.s32.totalorder %s129, %s132
    %p141 = scmp.eq.s32.totalorder %s15, 2
    %p142 = por %p140, %p141
    %p143 = scmp.ne.s32.totalorder %s132, %s133
    %p144 = scmp.eq.s32.totalorder %s15, 0
    %p145 = por %p143, %p144
    %p146 = scmp.ne.s32.totalorder %s132, %s133
    %p147 = scmp.eq.s32.totalorder %s16, 2
    %p148 = por %p146, %p147
    %p150 = scmp.ne.s32.totalorder %s133, %s149
    %p151 = scmp.eq.s32.totalorder %s16, 0
    %p152 = por %p150, %p151
    %p153 = scmp.le.s32.totalorder 1, %s10
    %p154 = scmp.lt.s32.totalorder %s10, 4
    %p155 = pnand %p153, %p154
    %p156 = pneg %p155
    // Predicated region
    $region9: #{full_factorized_forward.1} parent=5 // pred_check
      _
    $region10: #{full_factorized_forward.1} parent=5 // pred_check_branch
      %158 = sbr.rel (%p155) target = $region12
    $region11: #{full_factorized_forward.1} parent=5 // pred_region
      %s159 = ssub.s32 %s10, 1
      // Predicated region
      $region13: #{full_factorized_forward.1} parent=11 // pred_check
        %p160 = pneg %p85
      $region14: #{full_factorized_forward.1} parent=11 // pred_check_branch
        %162 = sbr.rel (%p160) target = $region16
      $region15: #{full_factorized_forward.1} parent=11 // pred_region
        %p163 = scmp.lt.s32.totalorder %s22, 0
        %s164 = scalar_select %p163, %s22, 0
        %s165 = smul.addr %s164, 8
        %s166 = scalar_lea.vmem %s1, %s165
      $region16: #{full_factorized_forward.1} parent=11 // pred_fallthru
        _
    $region12: #{full_factorized_forward.1} parent=5 // pred_fallthru
      _
    %p167 = scmp.lt.s32.totalorder %s10, 3
    // Predicated region
    $region17: #{full_factorized_forward.1} parent=5 // pred_check
      %p168 = pneg %p167
    $region18: #{full_factorized_forward.1} parent=5 // pred_check_branch
      %170 = sbr.rel (%p168) target = $region20
    $region19: #{full_factorized_forward.1} parent=5 // pred_region
      // Predicated region
      $region21: #{full_factorized_forward.1} parent=19 // pred_check
        %p171 = pneg %p53
      $region22: #{full_factorized_forward.1} parent=19 // pred_check_branch
        %173 = sbr.rel (%p171) target = $region24
      $region23: #{full_factorized_forward.1} parent=19 // pred_region
        %s174 = smul.u32 4, %s17
        %p175 = scmp.lt.s32.totalorder %s18, 2
        %s176 = scalar_select %p175, %s18, 2
        %p177 = scmp.lt.s32.totalorder %s19, 0
        %s178 = scalar_select %p177, %s19, 0
        %p179 = scmp.lt.s32.totalorder %s174, 3
        %s180 = scalar_select %p179, %s174, 3
        %s181 = smul.addr %s178, 4
        %s182 = sadd.s32 %s180, %s181
        %s183 = smul.addr %s176, 4
        %s184 = sadd.s32 %s182, %s183
        %s185 = smul.addr %s184, 8
        %s186 = scalar_lea.vmem %s0, %s185
        %s187 = smul.u32 4, %s17
      $region24: #{full_factorized_forward.1} parent=19 // pred_fallthru
        _
    $region20: #{full_factorized_forward.1} parent=5 // pred_fallthru
      _
    %p188 = scmp.le.s32.totalorder 1, %s10
    %p189 = scmp.lt.s32.totalorder %s10, 4
    %p190 = pnand %p188, %p189
    %p191 = pneg %p190
    // Predicated region
    $region25: #{full_factorized_forward.1} parent=5 // pred_check
      _
    $region26: #{full_factorized_forward.1} parent=5 // pred_check_branch
      %193 = sbr.rel (%p190) target = $region28
    $region27: #{full_factorized_forward.1} parent=5 // pred_region
      %s194 = ssub.s32 %s10, 1
      %s195 = smul.u32 4, %s20
      %p196 = scmp.lt.s32.totalorder %s21, 2
      %s197 = scalar_select %p196, %s21, 2
      %p198 = scmp.lt.s32.totalorder %s22, 0
      %s199 = scalar_select %p198, %s22, 0
      %p200 = scmp.lt.s32.totalorder %s195, 3
      %s201 = scalar_select %p200, %s195, 3
      %s202 = smul.addr %s199, 4
      %s203 = sadd.s32 %s201, %s202
      %s204 = smul.addr %s197, 4
      %s205 = sadd.s32 %s203, %s204
      %s206 = smul.addr %s205, 8
      %s207 = scalar_lea.vmem %s0, %s206
      %p208 = pneg %p59
      %p209 = pneg %p56
      %p210 = scmp.lt.s32.totalorder %s22, 0
      %s211 = scalar_select %p210, %s22, 0
      %s212 = smul.addr %s211, 8
      %s213 = scalar_lea.vmem %s1, %s212
      %p214 = pneg %p85
      %p215 = pneg %p82
      %p216 = pneg %p115
      %p217 = pneg %p112
      %s218 = smul.u32 4, %s20
      %p219 = scmp.lt.s32.totalorder %s21, 2
      %s220 = scalar_select %p219, %s21, 2
      %p221 = scmp.lt.s32.totalorder %s22, 0
      %s222 = scalar_select %p221, %s22, 0
      %p223 = scmp.lt.s32.totalorder %s218, 3
      %s224 = scalar_select %p223, %s218, 3
      %s225 = smul.addr %s222, 4
      %s226 = sadd.s32 %s224, %s225
      %s227 = smul.addr %s220, 4
      %s228 = sadd.s32 %s226, %s227
      %s229 = smul.addr %s228, 8
      %s230 = scalar_lea.vmem %s2, %s229
      %p231 = pneg %p145
      %p232 = pneg %p142
      %s233 = smul.u32 4, %s20
      %p234 = scmp.lt.s32.totalorder %s21, 2
      %s235 = scalar_select %p234, %s21, 2
      %p236 = scmp.lt.s32.totalorder %s22, 0
      %s237 = scalar_select %p236, %s22, 0
      %p238 = scmp.lt.s32.totalorder %s233, 3
      %s239 = scalar_select %p238, %s233, 3
      %s240 = smul.addr %s237, 4
      %s241 = sadd.s32 %s239, %s240
      %s242 = smul.addr %s235, 4
      %s243 = sadd.s32 %s241, %s242
      %s244 = smul.addr %s243, 8
      %s245 = scalar_lea.vmem %s3, %s244
      %s246 = smul.u32 4, %s20
      %p247 = scmp.lt.s32.totalorder %s21, 2
      %s248 = scalar_select %p247, %s21, 2
      %p249 = scmp.lt.s32.totalorder %s22, 0
      %s250 = scalar_select %p249, %s22, 0
      %p251 = scmp.lt.s32.totalorder %s246, 3
      %s252 = scalar_select %p251, %s246, 3
      %s253 = smul.addr %s250, 4
      %s254 = sadd.s32 %s252, %s253
      %s255 = smul.addr %s248, 4
      %s256 = sadd.s32 %s254, %s255
      %s257 = smul.addr %s256, 8
      %s258 = scalar_lea.vmem %s0, %s257
      %s259 = smul.u32 4, %s20
      %p260 = scmp.lt.s32.totalorder %s22, 0
      %s261 = scalar_select %p260, %s22, 0
      %s262 = smul.addr %s261, 8
      %s263 = scalar_lea.vmem %s1, %s262
      %s264 = smul.u32 4, %s20
      %p265 = scmp.lt.s32.totalorder %s21, 2
      %s266 = scalar_select %p265, %s21, 2
      %p267 = scmp.lt.s32.totalorder %s22, 0
      %s268 = scalar_select %p267, %s22, 0
      %p269 = scmp.lt.s32.totalorder %s264, 3
      %s270 = scalar_select %p269, %s264, 3
      %s271 = smul.addr %s268, 4
      %s272 = sadd.s32 %s270, %s271
      %s273 = smul.addr %s266, 4
      %s274 = sadd.s32 %s272, %s273
      %s275 = smul.addr %s274, 8
      %s276 = scalar_lea.vmem %s2, %s275
      %s277 = smul.u32 4, %s20
      %s278 = smul.u32 4, %s20
      %p279 = scmp.lt.s32.totalorder %s21, 2
      %s280 = scalar_select %p279, %s21, 2
      %p281 = scmp.lt.s32.totalorder %s22, 0
      %s282 = scalar_select %p281, %s22, 0
      %p283 = scmp.lt.s32.totalorder %s278, 3
      %s284 = scalar_select %p283, %s278, 3
      %s285 = smul.addr %s282, 4
      %s286 = sadd.s32 %s284, %s285
      %s287 = smul.addr %s280, 4
      %s288 = sadd.s32 %s286, %s287
      %s289 = smul.addr %s288, 8
      %s290 = scalar_lea.vmem %s3, %s289
      %s291 = smul.u32 4, %s20
      %v292 = vld [vmem:[%s263] sm:$0xff]
      %v293 = vld [vmem:[%s258] sm:$0xff]
      %v294 = vld [vmem:[%s258 + $0x8] sm:$0xff]
      %v295 = vld [vmem:[%s258 + $0x10] sm:$0xff]
      %v296 = vld [vmem:[%s258 + $0x18] sm:$0xff]
      %298 = vset.pattern.permute.xlu0 0
      %299 = vperm.xlu0 %298, %v292
      %v300 = vpop.permute.xlu0 %299
      %v302 = vsub.f32 %v293, %v300
      %v303 = vsub.f32 %v294, %v300
      %v304 = vsub.f32 %v295, %v300
      %v305 = vsub.f32 %v296, %v300
      %v306 = vround.ne.pseudo %v302
      %v307 = vround.ne.pseudo %v303
      %v308 = vround.ne.pseudo %v304
      %v309 = vround.ne.pseudo %v305
      %v310 = vadd.f32 %v306, %v300
      %v311 = vadd.f32 %v307, %v300
      %v312 = vadd.f32 %v308, %v300
      %v313 = vadd.f32 %v309, %v300
      %314 = vst [vmem:[%s276] sm:$0xff] %v310
      %315 = vst [vmem:[%s276 + $0x8] sm:$0xff] %v311
      %316 = vst [vmem:[%s276 + $0x10] sm:$0xff] %v312
      %317 = vst [vmem:[%s276 + $0x18] sm:$0xff] %v313
      %v318 = vsub.f32 %v310, 0.5
      %v319 = vsub.f32 %v311, 0.5
      %v320 = vsub.f32 %v312, 0.5
      %v321 = vsub.f32 %v313, 0.5
      %322 = vset.pattern.permute.xlu0 1
      %323 = vperm.xlu0 %322, %v292
      %v324 = vpop.permute.xlu0 %323
      %v326 = vmul.f32 %v324, %v318
      %v327 = vmul.f32 %v324, %v319
      %v328 = vmul.f32 %v324, %v320
      %v329 = vmul.f32 %v324, %v321
      %330 = vset.pattern.permute.xlu0 4
      %331 = vperm.xlu0 %330, %v292
      %v332 = vpop.permute.xlu0 %331
      %v334 = vadd.f32 %v326, %v332
      %v335 = vadd.f32 %v327, %v332
      %v336 = vadd.f32 %v328, %v332
      %v337 = vadd.f32 %v329, %v332
      %v338 = vtanh.pop %v334
      %v339 = vtanh.pop %v335
      %v340 = vtanh.pop %v336
      %v341 = vtanh.pop %v337
      %342 = vset.pattern.permute.xlu0 7
      %343 = vperm.xlu0 %342, %v292
      %v344 = vpop.permute.xlu0 %343
      %v346 = vmul.f32 %v344, %v338
      %v347 = vmul.f32 %v344, %v339
      %v348 = vmul.f32 %v344, %v340
      %v349 = vmul.f32 %v344, %v341
      %v350 = vadd.f32 %v334, %v346
      %v351 = vadd.f32 %v335, %v347
      %v352 = vadd.f32 %v336, %v348
      %v353 = vadd.f32 %v337, %v349
      %354 = vset.pattern.permute.xlu0 2
      %355 = vperm.xlu0 %354, %v292
      %v356 = vpop.permute.xlu0 %355
      %v358 = vmul.f32 %v356, %v318
      %v359 = vmul.f32 %v356, %v319
      %v360 = vmul.f32 %v356, %v320
      %v361 = vmul.f32 %v356, %v321
      %362 = vset.pattern.permute.xlu0 5
      %363 = vperm.xlu0 %362, %v292
      %v364 = vpop.permute.xlu0 %363
      %v366 = vadd.f32 %v358, %v364
      %v367 = vadd.f32 %v359, %v364
      %v368 = vadd.f32 %v360, %v364
      %v369 = vadd.f32 %v361, %v364
      %v370 = vtanh.pop %v366
      %v371 = vtanh.pop %v367
      %v372 = vtanh.pop %v368
      %v373 = vtanh.pop %v369
      %374 = vset.pattern.permute.xlu0 8
      %375 = vperm.xlu0 %374, %v292
      %v376 = vpop.permute.xlu0 %375
      %v378 = vmul.f32 %v376, %v370
      %v379 = vmul.f32 %v376, %v371
      %v380 = vmul.f32 %v376, %v372
      %v381 = vmul.f32 %v376, %v373
      %v382 = vadd.f32 %v366, %v378
      %v383 = vadd.f32 %v367, %v379
      %v384 = vadd.f32 %v368, %v380
      %v385 = vadd.f32 %v369, %v381
      %386 = vset.pattern.permute.xlu0 3
      %387 = vperm.xlu0 %386, %v292
      %v388 = vpop.permute.xlu0 %387
      %v390 = vmul.f32 %v388, %v318
      %v391 = vmul.f32 %v388, %v319
      %v392 = vmul.f32 %v388, %v320
      %v393 = vmul.f32 %v388, %v321
      %394 = vset.pattern.permute.xlu0 6
      %395 = vperm.xlu0 %394, %v292
      %v396 = vpop.permute.xlu0 %395
      %v398 = vadd.f32 %v390, %v396
      %v399 = vadd.f32 %v391, %v396
      %v400 = vadd.f32 %v392, %v396
      %v401 = vadd.f32 %v393, %v396
      %v402 = vtanh.pop %v398
      %v403 = vtanh.pop %v399
      %v404 = vtanh.pop %v400
      %v405 = vtanh.pop %v401
      %406 = vset.pattern.permute.xlu0 9
      %407 = vperm.xlu0 %406, %v292
      %v408 = vpop.permute.xlu0 %407
      %v410 = vmul.f32 %v408, %v402
      %v411 = vmul.f32 %v408, %v403
      %v412 = vmul.f32 %v408, %v404
      %v413 = vmul.f32 %v408, %v405
      %v414 = vadd.f32 %v398, %v410
      %v415 = vadd.f32 %v399, %v411
      %v416 = vadd.f32 %v400, %v412
      %v417 = vadd.f32 %v401, %v413
      %418 = vset.pattern.permute.xlu0 10
      %419 = vperm.xlu0 %418, %v292
      %v420 = vpop.permute.xlu0 %419
      %v422 = vmul.f32 %v420, %v350
      %v423 = vmul.f32 %v420, %v351
      %v424 = vmul.f32 %v420, %v352
      %v425 = vmul.f32 %v420, %v353
      %426 = vset.pattern.permute.xlu0 11
      %427 = vperm.xlu0 %426, %v292
      %v428 = vpop.permute.xlu0 %427
      %v430 = vmul.f32 %v428, %v382
      %v431 = vmul.f32 %v428, %v383
      %v432 = vmul.f32 %v428, %v384
      %v433 = vmul.f32 %v428, %v385
      %v434 = vadd.f32 %v422, %v430
      %v435 = vadd.f32 %v423, %v431
      %v436 = vadd.f32 %v424, %v432
      %v437 = vadd.f32 %v425, %v433
      %438 = vset.pattern.permute.xlu0 12
      %439 = vperm.xlu0 %438, %v292
      %v440 = vpop.permute.xlu0 %439
      %v442 = vmul.f32 %v440, %v414
      %v443 = vmul.f32 %v440, %v415
      %v444 = vmul.f32 %v440, %v416
      %v445 = vmul.f32 %v440, %v417
      %v446 = vadd.f32 %v434, %v442
      %v447 = vadd.f32 %v435, %v443
      %v448 = vadd.f32 %v436, %v444
      %v449 = vadd.f32 %v437, %v445
      %450 = vset.pattern.permute.xlu0 19
      %451 = vperm.xlu0 %450, %v292
      %v452 = vpop.permute.xlu0 %451
      %v454 = vadd.f32 %v446, %v452
      %v455 = vadd.f32 %v447, %v452
      %v456 = vadd.f32 %v448, %v452
      %v457 = vadd.f32 %v449, %v452
      %v458 = vtanh.pop %v454
      %v459 = vtanh.pop %v455
      %v460 = vtanh.pop %v456
      %v461 = vtanh.pop %v457
      %462 = vset.pattern.permute.xlu0 22
      %463 = vperm.xlu0 %462, %v292
      %v464 = vpop.permute.xlu0 %463
      %v466 = vmul.f32 %v464, %v458
      %v467 = vmul.f32 %v464, %v459
      %v468 = vmul.f32 %v464, %v460
      %v469 = vmul.f32 %v464, %v461
      %v470 = vadd.f32 %v454, %v466
      %v471 = vadd.f32 %v455, %v467
      %v472 = vadd.f32 %v456, %v468
      %v473 = vadd.f32 %v457, %v469
      %474 = vset.pattern.permute.xlu0 13
      %475 = vperm.xlu0 %474, %v292
      %v476 = vpop.permute.xlu0 %475
      %v478 = vmul.f32 %v476, %v350
      %v479 = vmul.f32 %v476, %v351
      %v480 = vmul.f32 %v476, %v352
      %v481 = vmul.f32 %v476, %v353
      %482 = vset.pattern.permute.xlu0 14
      %483 = vperm.xlu0 %482, %v292
      %v484 = vpop.permute.xlu0 %483
      %v486 = vmul.f32 %v484, %v382
      %v487 = vmul.f32 %v484, %v383
      %v488 = vmul.f32 %v484, %v384
      %v489 = vmul.f32 %v484, %v385
      %v490 = vadd.f32 %v478, %v486
      %v491 = vadd.f32 %v479, %v487
      %v492 = vadd.f32 %v480, %v488
      %v493 = vadd.f32 %v481, %v489
      %494 = vset.pattern.permute.xlu0 15
      %495 = vperm.xlu0 %494, %v292
      %v496 = vpop.permute.xlu0 %495
      %v498 = vmul.f32 %v496, %v414
      %v499 = vmul.f32 %v496, %v415
      %v500 = vmul.f32 %v496, %v416
      %v501 = vmul.f32 %v496, %v417
      %v502 = vadd.f32 %v490, %v498
      %v503 = vadd.f32 %v491, %v499
      %v504 = vadd.f32 %v492, %v500
      %v505 = vadd.f32 %v493, %v501
      %506 = vset.pattern.permute.xlu0 20
      %507 = vperm.xlu0 %506, %v292
      %v508 = vpop.permute.xlu0 %507
      %v510 = vadd.f32 %v502, %v508
      %v511 = vadd.f32 %v503, %v508
      %v512 = vadd.f32 %v504, %v508
      %v513 = vadd.f32 %v505, %v508
      %v514 = vtanh.pop %v510
      %v515 = vtanh.pop %v511
      %v516 = vtanh.pop %v512
      %v517 = vtanh.pop %v513
      %518 = vset.pattern.permute.xlu0 23
      %519 = vperm.xlu0 %518, %v292
      %v520 = vpop.permute.xlu0 %519
      %v522 = vmul.f32 %v520, %v514
      %v523 = vmul.f32 %v520, %v515
      %v524 = vmul.f32 %v520, %v516
      %v525 = vmul.f32 %v520, %v517
      %v526 = vadd.f32 %v510, %v522
      %v527 = vadd.f32 %v511, %v523
      %v528 = vadd.f32 %v512, %v524
      %v529 = vadd.f32 %v513, %v525
      %530 = vset.pattern.permute.xlu0 16
      %531 = vperm.xlu0 %530, %v292
      %v532 = vpop.permute.xlu0 %531
      %v534 = vmul.f32 %v532, %v350
      %v535 = vmul.f32 %v532, %v351
      %v536 = vmul.f32 %v532, %v352
      %v537 = vmul.f32 %v532, %v353
      %538 = vset.pattern.permute.xlu0 17
      %539 = vperm.xlu0 %538, %v292
      %v540 = vpop.permute.xlu0 %539
      %v542 = vmul.f32 %v540, %v382
      %v543 = vmul.f32 %v540, %v383
      %v544 = vmul.f32 %v540, %v384
      %v545 = vmul.f32 %v540, %v385
      %v546 = vadd.f32 %v534, %v542
      %v547 = vadd.f32 %v535, %v543
      %v548 = vadd.f32 %v536, %v544
      %v549 = vadd.f32 %v537, %v545
      %550 = vset.pattern.permute.xlu0 18
      %551 = vperm.xlu0 %550, %v292
      %v552 = vpop.permute.xlu0 %551
      %v554 = vmul.f32 %v552, %v414
      %v555 = vmul.f32 %v552, %v415
      %v556 = vmul.f32 %v552, %v416
      %v557 = vmul.f32 %v552, %v417
      %v558 = vadd.f32 %v546, %v554
      %v559 = vadd.f32 %v547, %v555
      %v560 = vadd.f32 %v548, %v556
      %v561 = vadd.f32 %v549, %v557
      %562 = vset.pattern.permute.xlu0 21
      %563 = vperm.xlu0 %562, %v292
      %v564 = vpop.permute.xlu0 %563
      %v566 = vadd.f32 %v558, %v564
      %v567 = vadd.f32 %v559, %v564
      %v568 = vadd.f32 %v560, %v564
      %v569 = vadd.f32 %v561, %v564
      %v570 = vtanh.pop %v566
      %v571 = vtanh.pop %v567
      %v572 = vtanh.pop %v568
      %v573 = vtanh.pop %v569
      %574 = vset.pattern.permute.xlu0 24
      %575 = vperm.xlu0 %574, %v292
      %v576 = vpop.permute.xlu0 %575
      %v578 = vmul.f32 %v576, %v570
      %v579 = vmul.f32 %v576, %v571
      %v580 = vmul.f32 %v576, %v572
      %v581 = vmul.f32 %v576, %v573
      %v582 = vadd.f32 %v566, %v578
      %v583 = vadd.f32 %v567, %v579
      %v584 = vadd.f32 %v568, %v580
      %v585 = vadd.f32 %v569, %v581
      %586 = vset.pattern.permute.xlu0 25
      %587 = vperm.xlu0 %586, %v292
      %v588 = vpop.permute.xlu0 %587
      %v590 = vmul.f32 %v588, %v470
      %v591 = vmul.f32 %v588, %v471
      %v592 = vmul.f32 %v588, %v472
      %v593 = vmul.f32 %v588, %v473
      %594 = vset.pattern.permute.xlu0 26
      %595 = vperm.xlu0 %594, %v292
      %v596 = vpop.permute.xlu0 %595
      %v598 = vmul.f32 %v596, %v526
      %v599 = vmul.f32 %v596, %v527
      %v600 = vmul.f32 %v596, %v528
      %v601 = vmul.f32 %v596, %v529
      %v602 = vadd.f32 %v590, %v598
      %v603 = vadd.f32 %v591, %v599
      %v604 = vadd.f32 %v592, %v600
      %v605 = vadd.f32 %v593, %v601
      %606 = vset.pattern.permute.xlu0 27
      %607 = vperm.xlu0 %606, %v292
      %v608 = vpop.permute.xlu0 %607
      %v610 = vmul.f32 %v608, %v582
      %v611 = vmul.f32 %v608, %v583
      %v612 = vmul.f32 %v608, %v584
      %v613 = vmul.f32 %v608, %v585
      %v614 = vadd.f32 %v602, %v610
      %v615 = vadd.f32 %v603, %v611
      %v616 = vadd.f32 %v604, %v612
      %v617 = vadd.f32 %v605, %v613
      %618 = vset.pattern.permute.xlu0 34
      %619 = vperm.xlu0 %618, %v292
      %v620 = vpop.permute.xlu0 %619
      %v622 = vadd.f32 %v614, %v620
      %v623 = vadd.f32 %v615, %v620
      %v624 = vadd.f32 %v616, %v620
      %v625 = vadd.f32 %v617, %v620
      %v626 = vtanh.pop %v622
      %v627 = vtanh.pop %v623
      %v628 = vtanh.pop %v624
      %v629 = vtanh.pop %v625
      %630 = vset.pattern.permute.xlu0 37
      %631 = vperm.xlu0 %630, %v292
      %v632 = vpop.permute.xlu0 %631
      %v634 = vmul.f32 %v632, %v626
      %v635 = vmul.f32 %v632, %v627
      %v636 = vmul.f32 %v632, %v628
      %v637 = vmul.f32 %v632, %v629
      %v638 = vadd.f32 %v622, %v634
      %v639 = vadd.f32 %v623, %v635
      %v640 = vadd.f32 %v624, %v636
      %v641 = vadd.f32 %v625, %v637
      %642 = vset.pattern.permute.xlu0 28
      %643 = vperm.xlu0 %642, %v292
      %v644 = vpop.permute.xlu0 %643
      %v646 = vmul.f32 %v644, %v470
      %v647 = vmul.f32 %v644, %v471
      %v648 = vmul.f32 %v644, %v472
      %v649 = vmul.f32 %v644, %v473
      %650 = vset.pattern.permute.xlu0 29
      %651 = vperm.xlu0 %650, %v292
      %v652 = vpop.permute.xlu0 %651
      %v654 = vmul.f32 %v652, %v526
      %v655 = vmul.f32 %v652, %v527
      %v656 = vmul.f32 %v652, %v528
      %v657 = vmul.f32 %v652, %v529
      %v658 = vadd.f32 %v646, %v654
      %v659 = vadd.f32 %v647, %v655
      %v660 = vadd.f32 %v648, %v656
      %v661 = vadd.f32 %v649, %v657
      %662 = vset.pattern.permute.xlu0 30
      %663 = vperm.xlu0 %662, %v292
      %v664 = vpop.permute.xlu0 %663
      %v666 = vmul.f32 %v664, %v582
      %v667 = vmul.f32 %v664, %v583
      %v668 = vmul.f32 %v664, %v584
      %v669 = vmul.f32 %v664, %v585
      %v670 = vadd.f32 %v658, %v666
      %v671 = vadd.f32 %v659, %v667
      %v672 = vadd.f32 %v660, %v668
      %v673 = vadd.f32 %v661, %v669
      %674 = vset.pattern.permute.xlu0 35
      %675 = vperm.xlu0 %674, %v292
      %v676 = vpop.permute.xlu0 %675
      %v678 = vadd.f32 %v670, %v676
      %v679 = vadd.f32 %v671, %v676
      %v680 = vadd.f32 %v672, %v676
      %v681 = vadd.f32 %v673, %v676
      %v682 = vtanh.pop %v678
      %v683 = vtanh.pop %v679
      %v684 = vtanh.pop %v680
      %v685 = vtanh.pop %v681
      %686 = vset.pattern.permute.xlu0 38
      %687 = vperm.xlu0 %686, %v292
      %v688 = vpop.permute.xlu0 %687
      %v690 = vmul.f32 %v688, %v682
      %v691 = vmul.f32 %v688, %v683
      %v692 = vmul.f32 %v688, %v684
      %v693 = vmul.f32 %v688, %v685
      %v694 = vadd.f32 %v678, %v690
      %v695 = vadd.f32 %v679, %v691
      %v696 = vadd.f32 %v680, %v692
      %v697 = vadd.f32 %v681, %v693
      %698 = vset.pattern.permute.xlu0 31
      %699 = vperm.xlu0 %698, %v292
      %v700 = vpop.permute.xlu0 %699
      %v702 = vmul.f32 %v700, %v470
      %v703 = vmul.f32 %v700, %v471
      %v704 = vmul.f32 %v700, %v472
      %v705 = vmul.f32 %v700, %v473
      %706 = vset.pattern.permute.xlu0 32
      %707 = vperm.xlu0 %706, %v292
      %v708 = vpop.permute.xlu0 %707
      %v710 = vmul.f32 %v708, %v526
      %v711 = vmul.f32 %v708, %v527
      %v712 = vmul.f32 %v708, %v528
      %v713 = vmul.f32 %v708, %v529
      %v714 = vadd.f32 %v702, %v710
      %v715 = vadd.f32 %v703, %v711
      %v716 = vadd.f32 %v704, %v712
      %v717 = vadd.f32 %v705, %v713
      %718 = vset.pattern.permute.xlu0 33
      %719 = vperm.xlu0 %718, %v292
      %v720 = vpop.permute.xlu0 %719
      %v722 = vmul.f32 %v720, %v582
      %v723 = vmul.f32 %v720, %v583
      %v724 = vmul.f32 %v720, %v584
      %v725 = vmul.f32 %v720, %v585
      %v726 = vadd.f32 %v714, %v722
      %v727 = vadd.f32 %v715, %v723
      %v728 = vadd.f32 %v716, %v724
      %v729 = vadd.f32 %v717, %v725
      %730 = vset.pattern.permute.xlu0 36
      %731 = vperm.xlu0 %730, %v292
      %v732 = vpop.permute.xlu0 %731
      %v734 = vadd.f32 %v726, %v732
      %v735 = vadd.f32 %v727, %v732
      %v736 = vadd.f32 %v728, %v732
      %v737 = vadd.f32 %v729, %v732
      %v738 = vtanh.pop %v734
      %v739 = vtanh.pop %v735
      %v740 = vtanh.pop %v736
      %v741 = vtanh.pop %v737
      %742 = vset.pattern.permute.xlu0 39
      %743 = vperm.xlu0 %742, %v292
      %v744 = vpop.permute.xlu0 %743
      %v746 = vmul.f32 %v744, %v738
      %v747 = vmul.f32 %v744, %v739
      %v748 = vmul.f32 %v744, %v740
      %v749 = vmul.f32 %v744, %v741
      %v750 = vadd.f32 %v734, %v746
      %v751 = vadd.f32 %v735, %v747
      %v752 = vadd.f32 %v736, %v748
      %v753 = vadd.f32 %v737, %v749
      %754 = vset.pattern.permute.xlu0 40
      %755 = vperm.xlu0 %754, %v292
      %v756 = vpop.permute.xlu0 %755
      %v758 = vmul.f32 %v756, %v638
      %v759 = vmul.f32 %v756, %v639
      %v760 = vmul.f32 %v756, %v640
      %v761 = vmul.f32 %v756, %v641
      %762 = vset.pattern.permute.xlu0 41
      %763 = vperm.xlu0 %762, %v292
      %v764 = vpop.permute.xlu0 %763
      %v766 = vmul.f32 %v764, %v694
      %v767 = vmul.f32 %v764, %v695
      %v768 = vmul.f32 %v764, %v696
      %v769 = vmul.f32 %v764, %v697
      %v770 = vadd.f32 %v758, %v766
      %v771 = vadd.f32 %v759, %v767
      %v772 = vadd.f32 %v760, %v768
      %v773 = vadd.f32 %v761, %v769
      %774 = vset.pattern.permute.xlu0 42
      %775 = vperm.xlu0 %774, %v292
      %v776 = vpop.permute.xlu0 %775
      %v778 = vmul.f32 %v776, %v750
      %v779 = vmul.f32 %v776, %v751
      %v780 = vmul.f32 %v776, %v752
      %v781 = vmul.f32 %v776, %v753
      %v782 = vadd.f32 %v770, %v778
      %v783 = vadd.f32 %v771, %v779
      %v784 = vadd.f32 %v772, %v780
      %v785 = vadd.f32 %v773, %v781
      %786 = vset.pattern.permute.xlu0 43
      %787 = vperm.xlu0 %786, %v292
      %v788 = vpop.permute.xlu0 %787
      %v790 = vadd.f32 %v782, %v788
      %v791 = vadd.f32 %v783, %v788
      %v792 = vadd.f32 %v784, %v788
      %v793 = vadd.f32 %v785, %v788
      %v794 = vtanh.pop %v790
      %v795 = vtanh.pop %v791
      %v796 = vtanh.pop %v792
      %v797 = vtanh.pop %v793
      %798 = vset.pattern.permute.xlu0 44
      %799 = vperm.xlu0 %798, %v292
      %v800 = vpop.permute.xlu0 %799
      %v802 = vmul.f32 %v800, %v794
      %v803 = vmul.f32 %v800, %v795
      %v804 = vmul.f32 %v800, %v796
      %v805 = vmul.f32 %v800, %v797
      %v806 = vadd.f32 %v790, %v802
      %v807 = vadd.f32 %v791, %v803
      %v808 = vadd.f32 %v792, %v804
      %v809 = vadd.f32 %v793, %v805
      %v810 = vadd.f32 %v310, 0.5
      %v811 = vadd.f32 %v311, 0.5
      %v812 = vadd.f32 %v312, 0.5
      %v813 = vadd.f32 %v313, 0.5
      %v814 = vmul.f32 %v324, %v810
      %v815 = vmul.f32 %v324, %v811
      %v816 = vmul.f32 %v324, %v812
      %v817 = vmul.f32 %v324, %v813
      %v818 = vadd.f32 %v814, %v332
      %v819 = vadd.f32 %v815, %v332
      %v820 = vadd.f32 %v816, %v332
      %v821 = vadd.f32 %v817, %v332
      %v822 = vtanh.pop %v818
      %v823 = vtanh.pop %v819
      %v824 = vtanh.pop %v820
      %v825 = vtanh.pop %v821
      %v826 = vmul.f32 %v344, %v822
      %v827 = vmul.f32 %v344, %v823
      %v828 = vmul.f32 %v344, %v824
      %v829 = vmul.f32 %v344, %v825
      %v830 = vadd.f32 %v818, %v826
      %v831 = vadd.f32 %v819, %v827
      %v832 = vadd.f32 %v820, %v828
      %v833 = vadd.f32 %v821, %v829
      %v834 = vmul.f32 %v356, %v810
      %v835 = vmul.f32 %v356, %v811
      %v836 = vmul.f32 %v356, %v812
      %v837 = vmul.f32 %v356, %v813
      %v838 = vadd.f32 %v834, %v364
      %v839 = vadd.f32 %v835, %v364
      %v840 = vadd.f32 %v836, %v364
      %v841 = vadd.f32 %v837, %v364
      %v842 = vtanh.pop %v838
      %v843 = vtanh.pop %v839
      %v844 = vtanh.pop %v840
      %v845 = vtanh.pop %v841
      %v846 = vmul.f32 %v376, %v842
      %v847 = vmul.f32 %v376, %v843
      %v848 = vmul.f32 %v376, %v844
      %v849 = vmul.f32 %v376, %v845
      %v850 = vadd.f32 %v838, %v846
      %v851 = vadd.f32 %v839, %v847
      %v852 = vadd.f32 %v840, %v848
      %v853 = vadd.f32 %v841, %v849
      %v854 = vmul.f32 %v388, %v810
      %v855 = vmul.f32 %v388, %v811
      %v856 = vmul.f32 %v388, %v812
      %v857 = vmul.f32 %v388, %v813
      %v858 = vadd.f32 %v854, %v396
      %v859 = vadd.f32 %v855, %v396
      %v860 = vadd.f32 %v856, %v396
      %v861 = vadd.f32 %v857, %v396
      %v862 = vtanh.pop %v858
      %v863 = vtanh.pop %v859
      %v864 = vtanh.pop %v860
      %v865 = vtanh.pop %v861
      %v866 = vmul.f32 %v408, %v862
      %v867 = vmul.f32 %v408, %v863
      %v868 = vmul.f32 %v408, %v864
      %v869 = vmul.f32 %v408, %v865
      %v870 = vadd.f32 %v858, %v866
      %v871 = vadd.f32 %v859, %v867
      %v872 = vadd.f32 %v860, %v868
      %v873 = vadd.f32 %v861, %v869
      %v874 = vmul.f32 %v420, %v830
      %v875 = vmul.f32 %v420, %v831
      %v876 = vmul.f32 %v420, %v832
      %v877 = vmul.f32 %v420, %v833
      %v878 = vmul.f32 %v428, %v850
      %v879 = vmul.f32 %v428, %v851
      %v880 = vmul.f32 %v428, %v852
      %v881 = vmul.f32 %v428, %v853
      %v882 = vadd.f32 %v874, %v878
      %v883 = vadd.f32 %v875, %v879
      %v884 = vadd.f32 %v876, %v880
      %v885 = vadd.f32 %v877, %v881
      %v886 = vmul.f32 %v440, %v870
      %v887 = vmul.f32 %v440, %v871
      %v888 = vmul.f32 %v440, %v872
      %v889 = vmul.f32 %v440, %v873
      %v890 = vadd.f32 %v882, %v886
      %v891 = vadd.f32 %v883, %v887
      %v892 = vadd.f32 %v884, %v888
      %v893 = vadd.f32 %v885, %v889
      %v894 = vadd.f32 %v890, %v452
      %v895 = vadd.f32 %v891, %v452
      %v896 = vadd.f32 %v892, %v452
      %v897 = vadd.f32 %v893, %v452
      %v898 = vtanh.pop %v894
      %v899 = vtanh.pop %v895
      %v900 = vtanh.pop %v896
      %v901 = vtanh.pop %v897
      %v902 = vmul.f32 %v464, %v898
      %v903 = vmul.f32 %v464, %v899
      %v904 = vmul.f32 %v464, %v900
      %v905 = vmul.f32 %v464, %v901
      %v906 = vadd.f32 %v894, %v902
      %v907 = vadd.f32 %v895, %v903
      %v908 = vadd.f32 %v896, %v904
      %v909 = vadd.f32 %v897, %v905
      %v910 = vmul.f32 %v476, %v830
      %v911 = vmul.f32 %v476, %v831
      %v912 = vmul.f32 %v476, %v832
      %v913 = vmul.f32 %v476, %v833
      %v914 = vmul.f32 %v484, %v850
      %v915 = vmul.f32 %v484, %v851
      %v916 = vmul.f32 %v484, %v852
      %v917 = vmul.f32 %v484, %v853
      %v918 = vadd.f32 %v910, %v914
      %v919 = vadd.f32 %v911, %v915
      %v920 = vadd.f32 %v912, %v916
      %v921 = vadd.f32 %v913, %v917
      %v922 = vmul.f32 %v496, %v870
      %v923 = vmul.f32 %v496, %v871
      %v924 = vmul.f32 %v496, %v872
      %v925 = vmul.f32 %v496, %v873
      %v926 = vadd.f32 %v918, %v922
      %v927 = vadd.f32 %v919, %v923
      %v928 = vadd.f32 %v920, %v924
      %v929 = vadd.f32 %v921, %v925
      %v930 = vadd.f32 %v926, %v508
      %v931 = vadd.f32 %v927, %v508
      %v932 = vadd.f32 %v928, %v508
      %v933 = vadd.f32 %v929, %v508
      %v934 = vtanh.pop %v930
      %v935 = vtanh.pop %v931
      %v936 = vtanh.pop %v932
      %v937 = vtanh.pop %v933
      %v938 = vmul.f32 %v520, %v934
      %v939 = vmul.f32 %v520, %v935
      %v940 = vmul.f32 %v520, %v936
      %v941 = vmul.f32 %v520, %v937
      %v942 = vadd.f32 %v930, %v938
      %v943 = vadd.f32 %v931, %v939
      %v944 = vadd.f32 %v932, %v940
      %v945 = vadd.f32 %v933, %v941
      %v946 = vmul.f32 %v532, %v830
      %v947 = vmul.f32 %v532, %v831
      %v948 = vmul.f32 %v532, %v832
      %v949 = vmul.f32 %v532, %v833
      %v950 = vmul.f32 %v540, %v850
      %v951 = vmul.f32 %v540, %v851
      %v952 = vmul.f32 %v540, %v852
      %v953 = vmul.f32 %v540, %v853
      %v954 = vadd.f32 %v946, %v950
      %v955 = vadd.f32 %v947, %v951
      %v956 = vadd.f32 %v948, %v952
      %v957 = vadd.f32 %v949, %v953
      %v958 = vmul.f32 %v552, %v870
      %v959 = vmul.f32 %v552, %v871
      %v960 = vmul.f32 %v552, %v872
      %v961 = vmul.f32 %v552, %v873
      %v962 = vadd.f32 %v954, %v958
      %v963 = vadd.f32 %v955, %v959
      %v964 = vadd.f32 %v956, %v960
      %v965 = vadd.f32 %v957, %v961
      %v966 = vadd.f32 %v962, %v564
      %v967 = vadd.f32 %v963, %v564
      %v968 = vadd.f32 %v964, %v564
      %v969 = vadd.f32 %v965, %v564
      %v970 = vtanh.pop %v966
      %v971 = vtanh.pop %v967
      %v972 = vtanh.pop %v968
      %v973 = vtanh.pop %v969
      %v974 = vmul.f32 %v576, %v970
      %v975 = vmul.f32 %v576, %v971
      %v976 = vmul.f32 %v576, %v972
      %v977 = vmul.f32 %v576, %v973
      %v978 = vadd.f32 %v966, %v974
      %v979 = vadd.f32 %v967, %v975
      %v980 = vadd.f32 %v968, %v976
      %v981 = vadd.f32 %v969, %v977
      %v982 = vmul.f32 %v588, %v906
      %v983 = vmul.f32 %v588, %v907
      %v984 = vmul.f32 %v588, %v908
      %v985 = vmul.f32 %v588, %v909
      %v986 = vmul.f32 %v596, %v942
      %v987 = vmul.f32 %v596, %v943
      %v988 = vmul.f32 %v596, %v944
      %v989 = vmul.f32 %v596, %v945
      %v990 = vadd.f32 %v982, %v986
      %v991 = vadd.f32 %v983, %v987
      %v992 = vadd.f32 %v984, %v988
      %v993 = vadd.f32 %v985, %v989
      %v994 = vmul.f32 %v608, %v978
      %v995 = vmul.f32 %v608, %v979
      %v996 = vmul.f32 %v608, %v980
      %v997 = vmul.f32 %v608, %v981
      %v998 = vadd.f32 %v990, %v994
      %v999 = vadd.f32 %v991, %v995
      %v1000 = vadd.f32 %v992, %v996
      %v1001 = vadd.f32 %v993, %v997
      %v1002 = vadd.f32 %v998, %v620
      %v1003 = vadd.f32 %v999, %v620
      %v1004 = vadd.f32 %v1000, %v620
      %v1005 = vadd.f32 %v1001, %v620
      %v1006 = vtanh.pop %v1002
      %v1007 = vtanh.pop %v1003
      %v1008 = vtanh.pop %v1004
      %v1009 = vtanh.pop %v1005
      %v1010 = vmul.f32 %v632, %v1006
      %v1011 = vmul.f32 %v632, %v1007
      %v1012 = vmul.f32 %v632, %v1008
      %v1013 = vmul.f32 %v632, %v1009
      %v1014 = vadd.f32 %v1002, %v1010
      %v1015 = vadd.f32 %v1003, %v1011
      %v1016 = vadd.f32 %v1004, %v1012
      %v1017 = vadd.f32 %v1005, %v1013
      %v1018 = vmul.f32 %v644, %v906
      %v1019 = vmul.f32 %v644, %v907
      %v1020 = vmul.f32 %v644, %v908
      %v1021 = vmul.f32 %v644, %v909
      %v1022 = vmul.f32 %v652, %v942
      %v1023 = vmul.f32 %v652, %v943
      %v1024 = vmul.f32 %v652, %v944
      %v1025 = vmul.f32 %v652, %v945
      %v1026 = vadd.f32 %v1018, %v1022
      %v1027 = vadd.f32 %v1019, %v1023
      %v1028 = vadd.f32 %v1020, %v1024
      %v1029 = vadd.f32 %v1021, %v1025
      %v1030 = vmul.f32 %v664, %v978
      %v1031 = vmul.f32 %v664, %v979
      %v1032 = vmul.f32 %v664, %v980
      %v1033 = vmul.f32 %v664, %v981
      %v1034 = vadd.f32 %v1026, %v1030
      %v1035 = vadd.f32 %v1027, %v1031
      %v1036 = vadd.f32 %v1028, %v1032
      %v1037 = vadd.f32 %v1029, %v1033
      %v1038 = vadd.f32 %v1034, %v676
      %v1039 = vadd.f32 %v1035, %v676
      %v1040 = vadd.f32 %v1036, %v676
      %v1041 = vadd.f32 %v1037, %v676
      %v1042 = vtanh.pop %v1038
      %v1043 = vtanh.pop %v1039
      %v1044 = vtanh.pop %v1040
      %v1045 = vtanh.pop %v1041
      %v1046 = vmul.f32 %v688, %v1042
      %v1047 = vmul.f32 %v688, %v1043
      %v1048 = vmul.f32 %v688, %v1044
      %v1049 = vmul.f32 %v688, %v1045
      %v1050 = vadd.f32 %v1038, %v1046
      %v1051 = vadd.f32 %v1039, %v1047
      %v1052 = vadd.f32 %v1040, %v1048
      %v1053 = vadd.f32 %v1041, %v1049
      %v1054 = vmul.f32 %v700, %v906
      %v1055 = vmul.f32 %v700, %v907
      %v1056 = vmul.f32 %v700, %v908
      %v1057 = vmul.f32 %v700, %v909
      %v1058 = vmul.f32 %v708, %v942
      %v1059 = vmul.f32 %v708, %v943
      %v1060 = vmul.f32 %v708, %v944
      %v1061 = vmul.f32 %v708, %v945
      %v1062 = vadd.f32 %v1054, %v1058
      %v1063 = vadd.f32 %v1055, %v1059
      %v1064 = vadd.f32 %v1056, %v1060
      %v1065 = vadd.f32 %v1057, %v1061
      %v1066 = vmul.f32 %v720, %v978
      %v1067 = vmul.f32 %v720, %v979
      %v1068 = vmul.f32 %v720, %v980
      %v1069 = vmul.f32 %v720, %v981
      %v1070 = vadd.f32 %v1062, %v1066
      %v1071 = vadd.f32 %v1063, %v1067
      %v1072 = vadd.f32 %v1064, %v1068
      %v1073 = vadd.f32 %v1065, %v1069
      %v1074 = vadd.f32 %v1070, %v732
      %v1075 = vadd.f32 %v1071, %v732
      %v1076 = vadd.f32 %v1072, %v732
      %v1077 = vadd.f32 %v1073, %v732
      %v1078 = vtanh.pop %v1074
      %v1079 = vtanh.pop %v1075
      %v1080 = vtanh.pop %v1076
      %v1081 = vtanh.pop %v1077
      %v1082 = vmul.f32 %v744, %v1078
      %v1083 = vmul.f32 %v744, %v1079
      %v1084 = vmul.f32 %v744, %v1080
      %v1085 = vmul.f32 %v744, %v1081
      %v1086 = vadd.f32 %v1074, %v1082
      %v1087 = vadd.f32 %v1075, %v1083
      %v1088 = vadd.f32 %v1076, %v1084
      %v1089 = vadd.f32 %v1077, %v1085
      %v1090 = vmul.f32 %v756, %v1014
      %v1091 = vmul.f32 %v756, %v1015
      %v1092 = vmul.f32 %v756, %v1016
      %v1093 = vmul.f32 %v756, %v1017
      %v1094 = vmul.f32 %v764, %v1050
      %v1095 = vmul.f32 %v764, %v1051
      %v1096 = vmul.f32 %v764, %v1052
      %v1097 = vmul.f32 %v764, %v1053
      %v1098 = vadd.f32 %v1090, %v1094
      %v1099 = vadd.f32 %v1091, %v1095
      %v1100 = vadd.f32 %v1092, %v1096
      %v1101 = vadd.f32 %v1093, %v1097
      %v1102 = vmul.f32 %v776, %v1086
      %v1103 = vmul.f32 %v776, %v1087
      %v1104 = vmul.f32 %v776, %v1088
      %v1105 = vmul.f32 %v776, %v1089
      %v1106 = vadd.f32 %v1098, %v1102
      %v1107 = vadd.f32 %v1099, %v1103
      %v1108 = vadd.f32 %v1100, %v1104
      %v1109 = vadd.f32 %v1101, %v1105
      %v1110 = vadd.f32 %v1106, %v788
      %v1111 = vadd.f32 %v1107, %v788
      %v1112 = vadd.f32 %v1108, %v788
      %v1113 = vadd.f32 %v1109, %v788
      %v1114 = vtanh.pop %v1110
      %v1115 = vtanh.pop %v1111
      %v1116 = vtanh.pop %v1112
      %v1117 = vtanh.pop %v1113
      %v1118 = vmul.f32 %v800, %v1114
      %v1119 = vmul.f32 %v800, %v1115
      %v1120 = vmul.f32 %v800, %v1116
      %v1121 = vmul.f32 %v800, %v1117
      %v1122 = vadd.f32 %v1110, %v1118
      %v1123 = vadd.f32 %v1111, %v1119
      %v1124 = vadd.f32 %v1112, %v1120
      %v1125 = vadd.f32 %v1113, %v1121
      %v1126 = vadd.f32 %v806, %v1122
      %v1127 = vadd.f32 %v807, %v1123
      %v1128 = vadd.f32 %v808, %v1124
      %v1129 = vadd.f32 %v809, %v1125
      %vm1130 = vcmp.gt.f32.partialorder %v1126, 0.0
      %vm1131 = vcmp.gt.f32.partialorder %v1127, 0.0
      %vm1132 = vcmp.gt.f32.partialorder %v1128, 0.0
      %vm1133 = vcmp.gt.f32.partialorder %v1129, 0.0
      %vm1134 = vcmp.lt.f32.partialorder %v1126, 0.0
      %vm1135 = vcmp.lt.f32.partialorder %v1127, 0.0
      %vm1136 = vcmp.lt.f32.partialorder %v1128, 0.0
      %vm1137 = vcmp.lt.f32.partialorder %v1129, 0.0
      %v1138 = vsel %vm1134, -1.0, 0.0
      %v1139 = vsel %vm1135, -1.0, 0.0
      %v1140 = vsel %vm1136, -1.0, 0.0
      %v1141 = vsel %vm1137, -1.0, 0.0
      %v1142 = vsel %vm1130, 1.0, %v1138
      %v1143 = vsel %vm1131, 1.0, %v1139
      %v1144 = vsel %vm1132, 1.0, %v1140
      %v1145 = vsel %vm1133, 1.0, %v1141
      %v1146 = vmul.f32 %v1142, %v1122
      %v1147 = vmul.f32 %v1143, %v1123
      %v1148 = vmul.f32 %v1144, %v1124
      %v1149 = vmul.f32 %v1145, %v1125
      %v1150 = vmul.f32 %v1146, -0.5
      %v1151 = vmul.f32 %v1147, -0.5
      %v1152 = vmul.f32 %v1148, -0.5
      %v1153 = vmul.f32 %v1149, -0.5
      %v1154 = vtanh.pop %v1150
      %v1155 = vtanh.pop %v1151
      %v1156 = vtanh.pop %v1152
      %v1157 = vtanh.pop %v1153
      %v1158 = vmul.f32 %v1142, %v806
      %v1159 = vmul.f32 %v1143, %v807
      %v1160 = vmul.f32 %v1144, %v808
      %v1161 = vmul.f32 %v1145, %v809
      %v1162 = vmul.f32 %v1158, -0.5
      %v1163 = vmul.f32 %v1159, -0.5
      %v1164 = vmul.f32 %v1160, -0.5
      %v1165 = vmul.f32 %v1161, -0.5
      %v1166 = vtanh.pop %v1162
      %v1167 = vtanh.pop %v1163
      %v1168 = vtanh.pop %v1164
      %v1169 = vtanh.pop %v1165
      %v1170 = vsub.f32 %v1154, %v1166
      %v1171 = vsub.f32 %v1155, %v1167
      %v1172 = vsub.f32 %v1156, %v1168
      %v1173 = vsub.f32 %v1157, %v1169
      %v1174 = vand.u32 2147483647, %v1170
      %v1175 = vand.u32 2147483647, %v1171
      %v1176 = vand.u32 2147483647, %v1172
      %v1177 = vand.u32 2147483647, %v1173
      %v1178 = vmul.f32 %v1174, 0.5
      %v1179 = vmul.f32 %v1175, 0.5
      %v1180 = vmul.f32 %v1176, 0.5
      %v1181 = vmul.f32 %v1177, 0.5
      %v1182 = vmax.f32 %v1178, 1e-06
      %v1183 = vmax.f32 %v1179, 1e-06
      %v1184 = vmax.f32 %v1180, 1e-06
      %v1185 = vmax.f32 %v1181, 1e-06
      %1186 = vst [vmem:[%s290] sm:$0xff] %v1182
      %1187 = vst [vmem:[%s290 + $0x8] sm:$0xff] %v1183
      %1188 = vst [vmem:[%s290 + $0x10] sm:$0xff] %v1184
      %1189 = vst [vmem:[%s290 + $0x18] sm:$0xff] %v1185
      %s1190 = smul.u32 4, %s20
      %p1191 = scmp.lt.s32.totalorder %s21, 2
      %s1192 = scalar_select %p1191, %s21, 2
      %p1193 = scmp.lt.s32.totalorder %s22, 0
      %s1194 = scalar_select %p1193, %s22, 0
      %p1195 = scmp.lt.s32.totalorder %s1190, 3
      %s1196 = scalar_select %p1195, %s1190, 3
      %s1197 = smul.addr %s1194, 4
      %s1198 = sadd.s32 %s1196, %s1197
      %s1199 = smul.addr %s1192, 4
      %s1200 = sadd.s32 %s1198, %s1199
      %s1201 = smul.addr %s1200, 8
      %s1202 = scalar_lea.vmem %s2, %s1201
      %s1203 = smul.u32 4, %s20
      %p1204 = scmp.lt.s32.totalorder %s21, 2
      %s1205 = scalar_select %p1204, %s21, 2
      %p1206 = scmp.lt.s32.totalorder %s22, 0
      %s1207 = scalar_select %p1206, %s22, 0
      %p1208 = scmp.lt.s32.totalorder %s1203, 3
      %s1209 = scalar_select %p1208, %s1203, 3
      %s1210 = smul.addr %s1207, 4
      %s1211 = sadd.s32 %s1209, %s1210
      %s1212 = smul.addr %s1205, 4
      %s1213 = sadd.s32 %s1211, %s1212
      %s1214 = smul.addr %s1213, 8
      %s1215 = scalar_lea.vmem %s3, %s1214
      // Predicated region
      $region29: #{full_factorized_forward.1} parent=27 // pred_check
        %p1216 = pneg %p112
      $region30: #{full_factorized_forward.1} parent=27 // pred_check_branch
        %1218 = sbr.rel (%p1216) target = $region32
      $region31: #{full_factorized_forward.1} parent=27 // pred_region
        %s1219 = smul.u32 4, %s20
      $region32: #{full_factorized_forward.1} parent=27 // pred_fallthru
        _
      // Predicated region
      $region33: #{full_factorized_forward.1} parent=27 // pred_check
        %p1220 = pneg %p142
      $region34: #{full_factorized_forward.1} parent=27 // pred_check_branch
        %1222 = sbr.rel (%p1220) target = $region36
      $region35: #{full_factorized_forward.1} parent=27 // pred_region
        %s1223 = smul.u32 4, %s20
      $region36: #{full_factorized_forward.1} parent=27 // pred_fallthru
        _
    $region28: #{full_factorized_forward.1} parent=5 // pred_fallthru
      _
    %p1224 = scmp.le.s32.totalorder 2, %s10
    // Predicated region
    $region37: #{full_factorized_forward.1} parent=5 // pred_check
      %p1225 = pneg %p1224
    $region38: #{full_factorized_forward.1} parent=5 // pred_check_branch
      %1227 = sbr.rel (%p1225) target = $region40
    $region39: #{full_factorized_forward.1} parent=5 // pred_region
      %s1228 = ssub.s32 %s10, 2
      // Predicated region
      $region41: #{full_factorized_forward.1} parent=39 // pred_check
        %p1229 = pneg %p118
      $region42: #{full_factorized_forward.1} parent=39 // pred_check_branch
        %1231 = sbr.rel (%p1229) target = $region44
      $region43: #{full_factorized_forward.1} parent=39 // pred_region
        %s1232 = smul.u32 4, %s23
        %p1233 = scmp.lt.s32.totalorder %s24, 2
        %s1234 = scalar_select %p1233, %s24, 2
        %p1235 = scmp.lt.s32.totalorder %s25, 0
        %s1236 = scalar_select %p1235, %s25, 0
        %p1237 = scmp.lt.s32.totalorder %s1232, 3
        %s1238 = scalar_select %p1237, %s1232, 3
        %s1239 = smul.addr %s1236, 4
        %s1240 = sadd.s32 %s1238, %s1239
        %s1241 = smul.addr %s1234, 4
        %s1242 = sadd.s32 %s1240, %s1241
        %s1243 = smul.addr %s1242, 8
        %s1244 = scalar_lea.vmem %s2, %s1243
      $region44: #{full_factorized_forward.1} parent=39 // pred_fallthru
        _
      // Predicated region
      $region45: #{full_factorized_forward.1} parent=39 // pred_check
        %p1245 = pneg %p148
      $region46: #{full_factorized_forward.1} parent=39 // pred_check_branch
        %1247 = sbr.rel (%p1245) target = $region48
      $region47: #{full_factorized_forward.1} parent=39 // pred_region
        %s1248 = smul.u32 4, %s23
        %p1249 = scmp.lt.s32.totalorder %s24, 2
        %s1250 = scalar_select %p1249, %s24, 2
        %p1251 = scmp.lt.s32.totalorder %s25, 0
        %s1252 = scalar_select %p1251, %s25, 0
        %p1253 = scmp.lt.s32.totalorder %s1248, 3
        %s1254 = scalar_select %p1253, %s1248, 3
        %s1255 = smul.addr %s1252, 4
        %s1256 = sadd.s32 %s1254, %s1255
        %s1257 = smul.addr %s1250, 4
        %s1258 = sadd.s32 %s1256, %s1257
        %s1259 = smul.addr %s1258, 8
        %s1260 = scalar_lea.vmem %s3, %s1259
      $region48: #{full_factorized_forward.1} parent=39 // pred_fallthru
        _
    $region40: #{full_factorized_forward.1} parent=5 // pred_fallthru
      _
  $region6: #{full_factorized_forward.1} parent=0 // loop_footer
    %s14 = sadd.s32 1, %s10
  $region7: #{full_factorized_forward.1} parent=0 // loop_footer_branch
    %9 = sbr.rel target = $region3
  $region8: #{full_factorized_forward.1} parent=0 // loop_exit
    _

</llo_original>
